<compile_context>
chip_gen: v5e
topology: v5e:2x2
jax: 0.10.0
libtpu: 0.0.40
codegen_flags: <defaults>
</compile_context>

<pallas_src>
import functools
import math

import jax
import jax.numpy as jnp
from jax.experimental import pallas as pl
from jax.experimental.pallas import tpu as pltpu


_INV_SQRT2 = 0.7071067811865476


def _erf_approx(x):
    # Abramowitz & Stegun 7.1.26 rational approximation (max abs err ~1.5e-7).
    # Uses only exp / mul / add / select (all lower cleanly in Mosaic) and
    # matches F.gelu's exact (erf) GELU to ~1e-7.
    a1, a2, a3, a4, a5 = (0.254829592, -0.284496736, 1.421413741,
                          -1.453152027, 1.061405429)
    p = 0.3275911
    ax = jnp.abs(x)
    t = 1.0 / (1.0 + p * ax)
    poly = t * (a1 + t * (a2 + t * (a3 + t * (a4 + t * a5))))
    y = 1.0 - poly * jnp.exp(-(ax * ax))
    return jnp.where(x < 0, -y, y)


def _gelu_exact(x):
    return 0.5 * x * (1.0 + _erf_approx(x * _INV_SQRT2))


def _lm_head_kernel(x_ref, wd_ref, bd_ref, g_ref, beta_ref, wv_ref, bv_ref,
                    o_ref, h_ref, *, eps):
    # dense -> GELU -> LayerNorm computed once per row tile (vocab step 0),
    # cached in VMEM scratch in the decoder-weight dtype (h_ref.dtype).
    @pl.when(pl.program_id(1) == 0)
    def _():
        h = jnp.dot(x_ref[...], wd_ref[...], preferred_element_type=jnp.float32)
        h = h + bd_ref[...].astype(jnp.float32)          # bias broadcast (1, E)
        h = _gelu_exact(h)
        mean = jnp.mean(h, axis=-1, keepdims=True)
        centered = h - mean
        var = jnp.mean(centered * centered, axis=-1, keepdims=True)
        hn = centered * jax.lax.rsqrt(var + eps)
        h_ref[...] = (hn * g_ref[...].astype(jnp.float32)
                      + beta_ref[...].astype(jnp.float32)).astype(h_ref.dtype)

    # Decoder projection for this (row tile, vocab tile): cached hidden is
    # already in the weight dtype -> straight to the MXU, f32 accumulation.
    logits = jnp.dot(h_ref[...], wv_ref[...], preferred_element_type=jnp.float32)
    logits = logits + bv_ref[...].astype(jnp.float32)
    o_ref[...] = logits.astype(o_ref.dtype)


# ----------------------------------------------------------------------------
# Generation-aware sizing helpers
# ----------------------------------------------------------------------------

def _round_up(x, m):
    return -(-x // m) * m


def _device_kind():
    try:
        return jax.devices()[0].device_kind.lower()
    except Exception:
        return ""


def _vmem_capacity_bytes():
    try:
        info = pltpu.get_tpu_info()
        cap = getattr(info, "vmem_capacity_bytes", None)
        if cap:
            return int(cap)
    except Exception:
        pass
    kind = _device_kind()
    if "v7" in kind:
        return 64 * 1024 * 1024
    return 128 * 1024 * 1024   # v4 / v5e / v5p / v6e


def _num_tensorcores():
    kind = _device_kind()
    # 2-TC (megacore-style) chips; v5e / v6e ("lite") are single-TC.
    if any(tag in kind for tag in ("v7", "v4", "v5p")):
        return 2
    return 1


def _choose_tiles(n_rows, vocab, embed, isx, isw, iso, ish, budget,
                  num_cores, align):
    """Pick (tile_rows, tile_vocab, v_pad) maximizing row-tile size (fewest
    decoder-weight re-reads) under a VMEM budget; keep >= num_cores row tiles."""
    v_pad0 = _round_up(vocab, 128)
    row_cap = min(2048,
                  _round_up(max(1, -(-n_rows // max(1, num_cores))), align),
                  _round_up(n_rows, align))
    best = None
    for tv in (2048, 1024, 512, 256, 128):
        if tv > v_pad0:
            continue
        v_pad = _round_up(vocab, tv)
        # Don't pay more than ~12.5% extra pad columns past the 128-aligned size.
        if v_pad - v_pad0 > max(128, v_pad0 // 8):
            continue
        # Conservative accounting (assumes double-buffered constants too, so the
        # choice is valid whether or not Buffered(1) single-buffering lands).
        fixed = (2 * (embed * embed + 3 * 8 * embed) * isw   # W_dense + (1,E) vecs
                 + 2 * embed * tv * isw                      # decoder-weight tile
                 + 2 * 8 * tv * isw)                         # decoder-bias tile
        per_row = 2 * embed * isx + 2 * tv * iso + embed * ish
        if fixed >= budget:
            continue
        tr = min(row_cap, ((budget - fixed) // per_row // align) * align)
        if tr < align:
            continue
        if best is None or (tr, tv) > (best[0], best[1]):
            best = (tr, tv, v_pad)
    if best is None:
        best = (align, 128, v_pad0)
    return best


def pad_decoder_params(params, multiple=1024):
    """Pre-pad decoder weight/bias once (hoists the per-call pad out of the
    forward path for vocabs that are not a multiple of the vocab tile)."""
    w = params["decoder_weight"]
    b = params["decoder_bias"]
    v = w.shape[1]
    v_pad = _round_up(v, multiple)
    if v_pad != v:
        params = dict(params)
        params["decoder_weight"] = jnp.pad(w, ((0, 0), (0, v_pad - v)))
        params["decoder_bias"] = jnp.pad(b, ((0, v_pad - v),))
    return params


# ----------------------------------------------------------------------------
# Wrapper
# ----------------------------------------------------------------------------

def roberta_lm_head(features, params, *, tile_rows=None, tile_vocab=None,
                    eps=1e-5, keep_padded_vocab=False):
    """features: [..., E].  params: dict with
       w_dense [E, E] (stored as [in, out]), b_dense [E],
       ln_weight [E], ln_bias [E],
       decoder_weight [E, V] (stored as [in, out]), decoder_bias [V]."""
    orig_shape = features.shape
    E = orig_shape[-1]
    x = features.reshape(-1, E)
    N = x.shape[0]
    out_dtype = features.dtype

    w_dense = params["w_dense"]
    b_dense = params["b_dense"].reshape(1, E)
    gamma = params["ln_weight"].reshape(1, E)
    beta = params["ln_bias"].reshape(1, E)
    w_dec = params["decoder_weight"]
    b_dec = params["decoder_bias"].reshape(1, -1)
    V = w_dec.shape[1]

    isx = jnp.dtype(x.dtype).itemsize
    isw = jnp.dtype(w_dec.dtype).itemsize
    iso = jnp.dtype(out_dtype).itemsize
    h_dtype = w_dec.dtype              # cache the hidden in the matmul dtype
    ish = jnp.dtype(h_dtype).itemsize

    # Generation-aware VMEM sizing (~109 MiB limit on v5e/v6e, ~54 MiB on v7x).
    vmem_cap = _vmem_capacity_bytes()
    vmem_limit = int(vmem_cap * 0.85)
    budget = max(vmem_limit - (6 << 20), vmem_limit // 2)
    num_cores = _num_tensorcores()
    align = max(8, 32 // isx)          # sublane alignment for the row dim

    if tile_rows is None or tile_vocab is None:
        tr, tv, v_pad = _choose_tiles(N, V, E, isx, isw, iso, ish, budget,
                                      num_cores, align)
        if tile_rows is None:
            tile_rows = tr
        if tile_vocab is None:
            tile_vocab = tv
        v_pad = _round_up(V, tile_vocab)
    else:
        v_pad = _round_up(V, max(128, tile_vocab))

    # Pad the vocab dim only if needed.  For production, pre-pad once with
    # pad_decoder_params() so this per-call copy of the ExV weight never fires.
    if v_pad != V:
        w_dec = jnp.pad(w_dec, ((0, 0), (0, v_pad - V)))
        b_dec = jnp.pad(b_dec, ((0, 0), (0, v_pad - V)))

    # Ragged row counts: zero-pad rows up to a multiple of the row tile.
    n_pad = _round_up(N, tile_rows)
    if n_pad != N:
        x = jnp.pad(x, ((0, n_pad - N), (0, 0)))

    grid = (n_pad // tile_rows, v_pad // tile_vocab)
    num_row_tiles = grid[0]

    cost = pl.CostEstimate(
        flops=int(2 * n_pad * E * E + 2 * n_pad * E * v_pad + 20 * n_pad * E),
        transcendentals=int(n_pad * E),
        bytes_accessed=int(n_pad * E * isx                       # activations in
                           + (E * E + 4 * E) * isw               # dense/LN params
                           + num_row_tiles * (E * v_pad + v_pad) * isw  # w_dec re-reads
                           + n_pad * v_pad * iso),               # logits out
    )

    def _run(single_buffer_consts):
        const_kwargs = ({"pipeline_mode": pl.Buffered(1)}
                        if single_buffer_consts else {})
        x_spec = pl.BlockSpec((tile_rows, E), lambda i, j: (i, 0))
        wd_spec = pl.BlockSpec((E, E), lambda i, j: (0, 0), **const_kwargs)
        vec_e_spec = pl.BlockSpec((1, E), lambda i, j: (0, 0), **const_kwargs)
        wv_spec = pl.BlockSpec((E, tile_vocab), lambda i, j: (0, j))
        bv_spec = pl.BlockSpec((1, tile_vocab), lambda i, j: (0, j))
        out_spec = pl.BlockSpec((tile_rows, tile_vocab), lambda i, j: (i, j))

        call = pl.pallas_call(
            functools.partial(_lm_head_kernel, eps=eps),
            out_shape=jax.ShapeDtypeStruct((n_pad, v_pad), out_dtype),
            grid_spec=pltpu.PrefetchScalarGridSpec(
                num_scalar_prefetch=0,
                grid=grid,
                in_specs=[x_spec, wd_spec, vec_e_spec, vec_e_spec, vec_e_spec,
                          wv_spec, bv_spec],
                out_specs=out_spec,
                scratch_shapes=[pltpu.VMEM((tile_rows, E), h_dtype)],
            ),
            compiler_params=pltpu.CompilerParams(
                dimension_semantics=("parallel", "arbitrary"),
                vmem_limit_bytes=vmem_limit,
            ),
            cost_estimate=cost,
        )
        return call(x, w_dense, b_dense, gamma, beta, w_dec, b_dec)

    try:
        out = _run(True)
    except Exception:
        # Fallback for JAX versions / lowering paths that reject Buffered(1)
        # single-buffering of the constant-index operands.
        out = _run(False)

    if n_pad != N:
        out = out[:N]
    if v_pad != V and not keep_padded_vocab:
        # For real vocabs, prefer keep_padded_vocab=True (mask downstream) to
        # avoid materializing a second full copy of the NxV logits.
        out = out[:, :V]
    return out.reshape(orig_shape[:-1] + (out.shape[-1],))


# ----------------------------------------------------------------------------
# Synthetic params + pure-JAX reference
# ----------------------------------------------------------------------------

def init_params(key, embed_dim, output_dim, dtype=jnp.float32):
    """Deterministic synthetic parameters. Matmul weights stored as [in, out]."""
    ks = jax.random.split(key, 6)
    s = 1.0 / math.sqrt(float(embed_dim))
    return {
        "w_dense": jax.random.normal(ks[0], (embed_dim, embed_dim), dtype) * s,
        "b_dense": jax.random.normal(ks[1], (embed_dim,), dtype) * 0.1,
        "ln_weight": (jnp.ones((embed_dim,), dtype)
                      + 0.1 * jax.random.normal(ks[2], (embed_dim,), dtype)),
        "ln_bias": 0.1 * jax.random.normal(ks[3], (embed_dim,), dtype),
        # Tied embedding / decoder weight ([E, V] = torch weight [V, E].T).
        "decoder_weight": jax.random.normal(ks[4], (embed_dim, output_dim),
                                            dtype) * s,
        # RobertaLMHead initializes this bias to zeros; use small random values
        # so the bias-add path is actually exercised by the check.
        "decoder_bias": 0.1 * jax.random.normal(ks[5], (output_dim,), dtype),
    }


def _reference(features, params, eps=1e-5):
    hp = jax.lax.Precision.HIGHEST
    x = jnp.dot(features, params["w_dense"], precision=hp) + params["b_dense"]
    x = jax.nn.gelu(x, approximate=False)
    mean = jnp.mean(x, axis=-1, keepdims=True)
    var = jnp.var(x, axis=-1, keepdims=True)
    x = (x - mean) / jnp.sqrt(var + eps)
    x = x * params["ln_weight"] + params["ln_bias"]
    return jnp.dot(x, params["decoder_weight"], precision=hp) + params["decoder_bias"]


if __name__ == "__main__":
    key = jax.random.PRNGKey(0)
    k_feat, k_feat2, k_param = jax.random.split(key, 3)

    batch, seq, embed_dim, output_dim = 2, 8, 128, 1024
    params = init_params(k_param, embed_dim, output_dim)

    # Aligned case: N = 16 rows, V = 1024 -> single large lane-dense tile.
    feats = jax.random.normal(k_feat, (batch, seq, embed_dim), jnp.float32)
    out = jax.block_until_ready(roberta_lm_head(feats, params))
    ref = _reference(feats, params)
    assert out.shape == (batch, seq, output_dim)
    assert jnp.allclose(out, ref, atol=2e-3, rtol=2e-3), "mismatch (aligned rows)"

    # Ragged case: N = 18 rows -> padded to the row tile in-wrapper, sliced back.
    feats2 = jax.random.normal(k_feat2, (batch, 9, embed_dim), jnp.float32)
    out2 = jax.block_until_ready(roberta_lm_head(feats2, params))
    ref2 = _reference(feats2, params)
    assert out2.shape == (batch, 9, output_dim)
    assert jnp.allclose(out2, ref2, atol=2e-3, rtol=2e-3), "mismatch (ragged rows)"

    print("KERNEL_OK")
</pallas_src>

<mosaic_0001>
module attributes {stable_mosaic.version = 11 : i64} {
  func.func @_lm_head_kernel(%arg0: i32, %arg1: i32, %arg2: memref<16x128xf32, #tpu.memory_space<vmem>>, %arg3: memref<128x128xf32, #tpu.memory_space<vmem>>, %arg4: memref<1x128xf32, #tpu.memory_space<vmem>>, %arg5: memref<1x128xf32, #tpu.memory_space<vmem>>, %arg6: memref<1x128xf32, #tpu.memory_space<vmem>>, %arg7: memref<128x1024xf32, #tpu.memory_space<vmem>>, %arg8: memref<1x1024xf32, #tpu.memory_space<vmem>>, %arg9: memref<16x1024xf32, #tpu.memory_space<vmem>>, %arg10: memref<16x128xf32, #tpu.memory_space<vmem>>) attributes {dimension_semantics = [#tpu.dimension_semantics<parallel>, #tpu.dimension_semantics<arbitrary>], iteration_bounds = array<i64: 1, 1>, scalar_prefetch = 0 : i64, scratch_operands = 1 : i64, tpu.core_type = #tpu.core_type<tc>, window_params = [{transform_indices = @transform_0, window_bounds = array<i64: 16, 128>}, {pipeline_mode = #tpu.pipeline_mode<synchronous>, transform_indices = @transform_1, window_bounds = array<i64: 128, 128>}, {pipeline_mode = #tpu.pipeline_mode<synchronous>, transform_indices = @transform_2, window_bounds = array<i64: 1, 128>}, {pipeline_mode = #tpu.pipeline_mode<synchronous>, transform_indices = @transform_3, window_bounds = array<i64: 1, 128>}, {pipeline_mode = #tpu.pipeline_mode<synchronous>, transform_indices = @transform_4, window_bounds = array<i64: 1, 128>}, {transform_indices = @transform_5, window_bounds = array<i64: 128, 1024>}, {transform_indices = @transform_6, window_bounds = array<i64: 1, 1024>}, {transform_indices = @transform_7, window_bounds = array<i64: 16, 1024>}]} {
    %c0_i32 = arith.constant 0 : i32
    %0 = arith.cmpi eq, %arg1, %c0_i32 : i32
    %1 = arith.extui %0 : i1 to i32
    %c0_i32_0 = arith.constant 0 : i32
    %2 = arith.cmpi ne, %1, %c0_i32_0 : i32
    scf.if %2 {
      %c0_8 = arith.constant 0 : index
      %c0_9 = arith.constant 0 : index
      %10 = vector.load %arg2[%c0_8, %c0_9] : memref<16x128xf32, #tpu.memory_space<vmem>>, vector<16x128xf32>
      %c0_10 = arith.constant 0 : index
      %c0_11 = arith.constant 0 : index
      %11 = vector.load %arg3[%c0_10, %c0_11] : memref<128x128xf32, #tpu.memory_space<vmem>>, vector<128x128xf32>
      %cst_12 = arith.constant dense<0.000000e+00> : vector<16x128xf32>
      %12 = tpu.matmul %10, %11, %cst_12 {dimension_numbers = #tpu.dot_dimension_numbers<[1], [0], [0], [1], [0, 0, 1, 1], [], []>} : vector<16x128xf32>, vector<128x128xf32>, vector<16x128xf32> -> vector<16x128xf32>
      %c0_13 = arith.constant 0 : index
      %c0_14 = arith.constant 0 : index
      %13 = vector.load %arg4[%c0_13, %c0_14] : memref<1x128xf32, #tpu.memory_space<vmem>>, vector<1x128xf32>
      %14 = vector.broadcast %13 : vector<1x128xf32> to vector<16x128xf32>
      %15 = arith.addf %12, %14 : vector<16x128xf32>
      %cst_15 = arith.constant 5.000000e-01 : f32
      %16 = vector.broadcast %cst_15 : f32 to vector<16x128xf32>
      %17 = arith.mulf %16, %15 : vector<16x128xf32>
      %cst_16 = arith.constant 0.707106769 : f32
      %18 = vector.broadcast %cst_16 : f32 to vector<16x128xf32>
      %19 = arith.mulf %15, %18 : vector<16x128xf32>
      %20 = math.absf %19 : vector<16x128xf32>
      %cst_17 = arith.constant 0.327591091 : f32
      %21 = vector.broadcast %cst_17 : f32 to vector<16x128xf32>
      %22 = arith.mulf %21, %20 : vector<16x128xf32>
      %cst_18 = arith.constant 1.000000e+00 : f32
      %23 = vector.broadcast %cst_18 : f32 to vector<16x128xf32>
      %24 = arith.addf %23, %22 : vector<16x128xf32>
      %cst_19 = arith.constant 1.000000e+00 : f32
      %25 = vector.broadcast %cst_19 : f32 to vector<16x128xf32>
      %26 = arith.divf %25, %24 : vector<16x128xf32>
      %cst_20 = arith.constant 1.06140542 : f32
      %27 = vector.broadcast %cst_20 : f32 to vector<16x128xf32>
      %28 = arith.mulf %26, %27 : vector<16x128xf32>
      %cst_21 = arith.constant -1.45315206 : f32
      %29 = vector.broadcast %cst_21 : f32 to vector<16x128xf32>
      %30 = arith.addf %29, %28 : vector<16x128xf32>
      %31 = arith.mulf %26, %30 : vector<16x128xf32>
      %cst_22 = arith.constant 1.42141378 : f32
      %32 = vector.broadcast %cst_22 : f32 to vector<16x128xf32>
      %33 = arith.addf %32, %31 : vector<16x128xf32>
      %34 = arith.mulf %26, %33 : vector<16x128xf32>
      %cst_23 = arith.constant -0.284496725 : f32
      %35 = vector.broadcast %cst_23 : f32 to vector<16x128xf32>
      %36 = arith.addf %35, %34 : vector<16x128xf32>
      %37 = arith.mulf %26, %36 : vector<16x128xf32>
      %cst_24 = arith.constant 0.254829586 : f32
      %38 = vector.broadcast %cst_24 : f32 to vector<16x128xf32>
      %39 = arith.addf %38, %37 : vector<16x128xf32>
      %40 = arith.mulf %26, %39 : vector<16x128xf32>
      %41 = arith.mulf %20, %20 : vector<16x128xf32>
      %cst_25 = arith.constant 0.000000e+00 : f32
      %42 = vector.broadcast %cst_25 : f32 to vector<16x128xf32>
      %43 = arith.subf %42, %41 : vector<16x128xf32>
      %44 = math.exp %43 : vector<16x128xf32>
      %45 = arith.mulf %40, %44 : vector<16x128xf32>
      %cst_26 = arith.constant 1.000000e+00 : f32
      %46 = vector.broadcast %cst_26 : f32 to vector<16x128xf32>
      %47 = arith.subf %46, %45 : vector<16x128xf32>
      %cst_27 = arith.constant 0.000000e+00 : f32
      %48 = vector.broadcast %cst_27 : f32 to vector<16x128xf32>
      %49 = arith.cmpf olt, %19, %48 : vector<16x128xf32>
      %cst_28 = arith.constant 0.000000e+00 : f32
      %50 = vector.broadcast %cst_28 : f32 to vector<16x128xf32>
      %51 = arith.subf %50, %47 : vector<16x128xf32>
      %52 = arith.select %49, %51, %47 : vector<16x128xi1>, vector<16x128xf32>
      %cst_29 = arith.constant 1.000000e+00 : f32
      %53 = vector.broadcast %cst_29 : f32 to vector<16x128xf32>
      %54 = arith.addf %53, %52 : vector<16x128xf32>
      %55 = arith.mulf %17, %54 : vector<16x128xf32>
      %cst_30 = arith.constant dense<0.000000e+00> : vector<16xf32>
      %56 = vector.multi_reduction <add>, %55, %cst_30 [1] : vector<16x128xf32> to vector<16xf32>
      %57 = vector.shape_cast %56 : vector<16xf32> to vector<16x1xf32>
      %cst_31 = arith.constant 1.280000e+02 : f32
      %58 = vector.broadcast %cst_31 : f32 to vector<16x1xf32>
      %59 = arith.divf %57, %58 : vector<16x1xf32>
      %60 = vector.broadcast %59 : vector<16x1xf32> to vector<16x128xf32>
      %61 = arith.subf %55, %60 : vector<16x128xf32>
      %62 = arith.mulf %61, %61 : vector<16x128xf32>
      %cst_32 = arith.constant dense<0.000000e+00> : vector<16xf32>
      %63 = vector.multi_reduction <add>, %62, %cst_32 [1] : vector<16x128xf32> to vector<16xf32>
      %64 = vector.shape_cast %63 : vector<16xf32> to vector<16x1xf32>
      %cst_33 = arith.constant 1.280000e+02 : f32
      %65 = vector.broadcast %cst_33 : f32 to vector<16x1xf32>
      %66 = arith.divf %64, %65 : vector<16x1xf32>
      %cst_34 = arith.constant 9.99999974E-6 : f32
      %67 = vector.broadcast %cst_34 : f32 to vector<16x1xf32>
      %68 = arith.addf %66, %67 : vector<16x1xf32>
      %69 = math.rsqrt %68 : vector<16x1xf32>
      %70 = vector.broadcast %69 : vector<16x1xf32> to vector<16x128xf32>
      %71 = arith.mulf %61, %70 : vector<16x128xf32>
      %c0_35 = arith.constant 0 : index
      %c0_36 = arith.constant 0 : index
      %72 = vector.load %arg5[%c0_35, %c0_36] : memref<1x128xf32, #tpu.memory_space<vmem>>, vector<1x128xf32>
      %73 = vector.broadcast %72 : vector<1x128xf32> to vector<16x128xf32>
      %74 = arith.mulf %71, %73 : vector<16x128xf32>
      %c0_37 = arith.constant 0 : index
      %c0_38 = arith.constant 0 : index
      %75 = vector.load %arg6[%c0_37, %c0_38] : memref<1x128xf32, #tpu.memory_space<vmem>>, vector<1x128xf32>
      %76 = vector.broadcast %75 : vector<1x128xf32> to vector<16x128xf32>
      %77 = arith.addf %74, %76 : vector<16x128xf32>
      %c0_39 = arith.constant 0 : index
      %c0_40 = arith.constant 0 : index
      %78 = vector.load %arg10[%c0_39, %c0_40] : memref<16x128xf32, #tpu.memory_space<vmem>>, vector<16x128xf32>
      tpu.vector_store %arg10[%c0_39, %c0_40], %77 {strides = array<i32>} : memref<16x128xf32, #tpu.memory_space<vmem>>, vector<16x128xf32>,
    } else {
    }
    %c0 = arith.constant 0 : index
    %c0_1 = arith.constant 0 : index
    %3 = vector.load %arg10[%c0, %c0_1] : memref<16x128xf32, #tpu.memory_space<vmem>>, vector<16x128xf32>
    %c0_2 = arith.constant 0 : index
    %c0_3 = arith.constant 0 : index
    %4 = vector.load %arg7[%c0_2, %c0_3] : memref<128x1024xf32, #tpu.memory_space<vmem>>, vector<128x1024xf32>
    %cst = arith.constant dense<0.000000e+00> : vector<16x1024xf32>
    %5 = tpu.matmul %3, %4, %cst {dimension_numbers = #tpu.dot_dimension_numbers<[1], [0], [0], [1], [0, 0, 1, 1], [], []>} : vector<16x128xf32>, vector<128x1024xf32>, vector<16x1024xf32> -> vector<16x1024xf32>
    %c0_4 = arith.constant 0 : index
    %c0_5 = arith.constant 0 : index
    %6 = vector.load %arg8[%c0_4, %c0_5] : memref<1x1024xf32, #tpu.memory_space<vmem>>, vector<1x1024xf32>
    %7 = vector.broadcast %6 : vector<1x1024xf32> to vector<16x1024xf32>
    %8 = arith.addf %5, %7 : vector<16x1024xf32>
    %c0_6 = arith.constant 0 : index
    %c0_7 = arith.constant 0 : index
    %9 = vector.load %arg9[%c0_6, %c0_7] : memref<16x1024xf32, #tpu.memory_space<vmem>>, vector<16x1024xf32>
    tpu.vector_store %arg9[%c0_6, %c0_7], %8 {strides = array<i32>} : memref<16x1024xf32, #tpu.memory_space<vmem>>, vector<16x1024xf32>,
    return
  }
  func.func @transform_0(%arg0: i32, %arg1: i32) -> (i32, i32) {
    %c0_i32 = arith.constant 0 : i32
    %c0_i32_0 = arith.constant 0 : i32
    return %arg0, %c0_i32 : i32, i32
  }
  func.func @transform_1(%arg0: i32, %arg1: i32) -> (i32, i32) {
    %c0_i32 = arith.constant 0 : i32
    %c0_i32_0 = arith.constant 0 : i32
    %c0_i32_1 = arith.constant 0 : i32
    return %c0_i32, %c0_i32_0 : i32, i32
  }
  func.func @transform_2(%arg0: i32, %arg1: i32) -> (i32, i32) {
    %c0_i32 = arith.constant 0 : i32
    %c0_i32_0 = arith.constant 0 : i32
    %c0_i32_1 = arith.constant 0 : i32
    return %c0_i32, %c0_i32_0 : i32, i32
  }
  func.func @transform_3(%arg0: i32, %arg1: i32) -> (i32, i32) {
    %c0_i32 = arith.constant 0 : i32
    %c0_i32_0 = arith.constant 0 : i32
    %c0_i32_1 = arith.constant 0 : i32
    return %c0_i32, %c0_i32_0 : i32, i32
  }
  func.func @transform_4(%arg0: i32, %arg1: i32) -> (i32, i32) {
    %c0_i32 = arith.constant 0 : i32
    %c0_i32_0 = arith.constant 0 : i32
    %c0_i32_1 = arith.constant 0 : i32
    return %c0_i32, %c0_i32_0 : i32, i32
  }
  func.func @transform_5(%arg0: i32, %arg1: i32) -> (i32, i32) {
    %c0_i32 = arith.constant 0 : i32
    %c0_i32_0 = arith.constant 0 : i32
    return %c0_i32, %arg1 : i32, i32
  }
  func.func @transform_6(%arg0: i32, %arg1: i32) -> (i32, i32) {
    %c0_i32 = arith.constant 0 : i32
    %c0_i32_0 = arith.constant 0 : i32
    return %c0_i32, %arg1 : i32, i32
  }
  func.func @transform_7(%arg0: i32, %arg1: i32) -> (i32, i32) {
    %c0_i32 = arith.constant 0 : i32
    return %arg0, %arg1 : i32, i32
  }
}

module attributes {stable_mosaic.version = 11 : i64} {
  func.func @_lm_head_kernel(%arg0: i32, %arg1: i32, %arg2: memref<16x128xf32, #tpu.memory_space<vmem>>, %arg3: memref<128x128xf32, #tpu.memory_space<vmem>>, %arg4: memref<1x128xf32, #tpu.memory_space<vmem>>, %arg5: memref<1x128xf32, #tpu.memory_space<vmem>>, %arg6: memref<1x128xf32, #tpu.memory_space<vmem>>, %arg7: memref<128x1024xf32, #tpu.memory_space<vmem>>, %arg8: memref<1x1024xf32, #tpu.memory_space<vmem>>, %arg9: memref<16x1024xf32, #tpu.memory_space<vmem>>, %arg10: memref<16x128xf32, #tpu.memory_space<vmem>>) attributes {dimension_semantics = [#tpu.dimension_semantics<parallel>, #tpu.dimension_semantics<arbitrary>], iteration_bounds = array<i64: 1, 1>, scalar_prefetch = 0 : i64, scratch_operands = 1 : i64, tpu.core_type = #tpu.core_type<tc>, window_params = [{transform_indices = @transform_0, window_bounds = array<i64: 16, 128>}, {pipeline_mode = #tpu.pipeline_mode<synchronous>, transform_indices = @transform_1, window_bounds = array<i64: 128, 128>}, {pipeline_mode = #tpu.pipeline_mode<synchronous>, transform_indices = @transform_2, window_bounds = array<i64: 1, 128>}, {pipeline_mode = #tpu.pipeline_mode<synchronous>, transform_indices = @transform_3, window_bounds = array<i64: 1, 128>}, {pipeline_mode = #tpu.pipeline_mode<synchronous>, transform_indices = @transform_4, window_bounds = array<i64: 1, 128>}, {transform_indices = @transform_5, window_bounds = array<i64: 128, 1024>}, {transform_indices = @transform_6, window_bounds = array<i64: 1, 1024>}, {transform_indices = @transform_7, window_bounds = array<i64: 16, 1024>}]} {
    %c0_i32 = arith.constant 0 : i32
    %0 = arith.cmpi eq, %arg1, %c0_i32 : i32
    %1 = arith.extui %0 : i1 to i32
    %c0_i32_0 = arith.constant 0 : i32
    %2 = arith.cmpi ne, %1, %c0_i32_0 : i32
    scf.if %2 {
      %c0_8 = arith.constant 0 : index
      %c0_9 = arith.constant 0 : index
      %10 = vector.load %arg2[%c0_8, %c0_9] : memref<16x128xf32, #tpu.memory_space<vmem>>, vector<16x128xf32>
      %c0_10 = arith.constant 0 : index
      %c0_11 = arith.constant 0 : index
      %11 = vector.load %arg3[%c0_10, %c0_11] : memref<128x128xf32, #tpu.memory_space<vmem>>, vector<128x128xf32>
      %cst_12 = arith.constant dense<0.000000e+00> : vector<16x128xf32>
      %12 = tpu.matmul %10, %11, %cst_12 {dimension_numbers = #tpu.dot_dimension_numbers<[1], [0], [0], [1], [0, 0, 1, 1], [], []>} : vector<16x128xf32>, vector<128x128xf32>, vector<16x128xf32> -> vector<16x128xf32>
      %c0_13 = arith.constant 0 : index
      %c0_14 = arith.constant 0 : index
      %13 = vector.load %arg4[%c0_13, %c0_14] : memref<1x128xf32, #tpu.memory_space<vmem>>, vector<1x128xf32>
      %14 = vector.broadcast %13 : vector<1x128xf32> to vector<16x128xf32>
      %15 = arith.addf %12, %14 : vector<16x128xf32>
      %cst_15 = arith.constant 5.000000e-01 : f32
      %16 = vector.broadcast %cst_15 : f32 to vector<16x128xf32>
      %17 = arith.mulf %16, %15 : vector<16x128xf32>
      %cst_16 = arith.constant 0.707106769 : f32
      %18 = vector.broadcast %cst_16 : f32 to vector<16x128xf32>
      %19 = arith.mulf %15, %18 : vector<16x128xf32>
      %20 = math.absf %19 : vector<16x128xf32>
      %cst_17 = arith.constant 0.327591091 : f32
      %21 = vector.broadcast %cst_17 : f32 to vector<16x128xf32>
      %22 = arith.mulf %21, %20 : vector<16x128xf32>
      %cst_18 = arith.constant 1.000000e+00 : f32
      %23 = vector.broadcast %cst_18 : f32 to vector<16x128xf32>
      %24 = arith.addf %23, %22 : vector<16x128xf32>
      %cst_19 = arith.constant 1.000000e+00 : f32
      %25 = vector.broadcast %cst_19 : f32 to vector<16x128xf32>
      %26 = arith.divf %25, %24 : vector<16x128xf32>
      %cst_20 = arith.constant 1.06140542 : f32
      %27 = vector.broadcast %cst_20 : f32 to vector<16x128xf32>
      %28 = arith.mulf %26, %27 : vector<16x128xf32>
      %cst_21 = arith.constant -1.45315206 : f32
      %29 = vector.broadcast %cst_21 : f32 to vector<16x128xf32>
      %30 = arith.addf %29, %28 : vector<16x128xf32>
      %31 = arith.mulf %26, %30 : vector<16x128xf32>
      %cst_22 = arith.constant 1.42141378 : f32
      %32 = vector.broadcast %cst_22 : f32 to vector<16x128xf32>
      %33 = arith.addf %32, %31 : vector<16x128xf32>
      %34 = arith.mulf %26, %33 : vector<16x128xf32>
      %cst_23 = arith.constant -0.284496725 : f32
      %35 = vector.broadcast %cst_23 : f32 to vector<16x128xf32>
      %36 = arith.addf %35, %34 : vector<16x128xf32>
      %37 = arith.mulf %26, %36 : vector<16x128xf32>
      %cst_24 = arith.constant 0.254829586 : f32
      %38 = vector.broadcast %cst_24 : f32 to vector<16x128xf32>
      %39 = arith.addf %38, %37 : vector<16x128xf32>
      %40 = arith.mulf %26, %39 : vector<16x128xf32>
      %41 = arith.mulf %20, %20 : vector<16x128xf32>
      %cst_25 = arith.constant 0.000000e+00 : f32
      %42 = vector.broadcast %cst_25 : f32 to vector<16x128xf32>
      %43 = arith.subf %42, %41 : vector<16x128xf32>
      %44 = math.exp %43 : vector<16x128xf32>
      %45 = arith.mulf %40, %44 : vector<16x128xf32>
      %cst_26 = arith.constant 1.000000e+00 : f32
      %46 = vector.broadcast %cst_26 : f32 to vector<16x128xf32>
      %47 = arith.subf %46, %45 : vector<16x128xf32>
      %cst_27 = arith.constant 0.000000e+00 : f32
      %48 = vector.broadcast %cst_27 : f32 to vector<16x128xf32>
      %49 = arith.cmpf olt, %19, %48 : vector<16x128xf32>
      %cst_28 = arith.constant 0.000000e+00 : f32
      %50 = vector.broadcast %cst_28 : f32 to vector<16x128xf32>
      %51 = arith.subf %50, %47 : vector<16x128xf32>
      %52 = arith.select %49, %51, %47 : vector<16x128xi1>, vector<16x128xf32>
      %cst_29 = arith.constant 1.000000e+00 : f32
      %53 = vector.broadcast %cst_29 : f32 to vector<16x128xf32>
      %54 = arith.addf %53, %52 : vector<16x128xf32>
      %55 = arith.mulf %17, %54 : vector<16x128xf32>
      %cst_30 = arith.constant dense<0.000000e+00> : vector<16xf32>
      %56 = vector.multi_reduction <add>, %55, %cst_30 [1] : vector<16x128xf32> to vector<16xf32>
      %57 = vector.shape_cast %56 : vector<16xf32> to vector<16x1xf32>
      %cst_31 = arith.constant 1.280000e+02 : f32
      %58 = vector.broadcast %cst_31 : f32 to vector<16x1xf32>
      %59 = arith.divf %57, %58 : vector<16x1xf32>
      %60 = vector.broadcast %59 : vector<16x1xf32> to vector<16x128xf32>
      %61 = arith.subf %55, %60 : vector<16x128xf32>
      %62 = arith.mulf %61, %61 : vector<16x128xf32>
      %cst_32 = arith.constant dense<0.000000e+00> : vector<16xf32>
      %63 = vector.multi_reduction <add>, %62, %cst_32 [1] : vector<16x128xf32> to vector<16xf32>
      %64 = vector.shape_cast %63 : vector<16xf32> to vector<16x1xf32>
      %cst_33 = arith.constant 1.280000e+02 : f32
      %65 = vector.broadcast %cst_33 : f32 to vector<16x1xf32>
      %66 = arith.divf %64, %65 : vector<16x1xf32>
      %cst_34 = arith.constant 9.99999974E-6 : f32
      %67 = vector.broadcast %cst_34 : f32 to vector<16x1xf32>
      %68 = arith.addf %66, %67 : vector<16x1xf32>
      %69 = math.rsqrt %68 : vector<16x1xf32>
      %70 = vector.broadcast %69 : vector<16x1xf32> to vector<16x128xf32>
      %71 = arith.mulf %61, %70 : vector<16x128xf32>
      %c0_35 = arith.constant 0 : index
      %c0_36 = arith.constant 0 : index
      %72 = vector.load %arg5[%c0_35, %c0_36] : memref<1x128xf32, #tpu.memory_space<vmem>>, vector<1x128xf32>
      %73 = vector.broadcast %72 : vector<1x128xf32> to vector<16x128xf32>
      %74 = arith.mulf %71, %73 : vector<16x128xf32>
      %c0_37 = arith.constant 0 : index
      %c0_38 = arith.constant 0 : index
      %75 = vector.load %arg6[%c0_37, %c0_38] : memref<1x128xf32, #tpu.memory_space<vmem>>, vector<1x128xf32>
      %76 = vector.broadcast %75 : vector<1x128xf32> to vector<16x128xf32>
      %77 = arith.addf %74, %76 : vector<16x128xf32>
      %c0_39 = arith.constant 0 : index
      %c0_40 = arith.constant 0 : index
      %78 = vector.load %arg10[%c0_39, %c0_40] : memref<16x128xf32, #tpu.memory_space<vmem>>, vector<16x128xf32>
      tpu.vector_store %arg10[%c0_39, %c0_40], %77 {strides = array<i32>} : memref<16x128xf32, #tpu.memory_space<vmem>>, vector<16x128xf32>,
    } else {
    }
    %c0 = arith.constant 0 : index
    %c0_1 = arith.constant 0 : index
    %3 = vector.load %arg10[%c0, %c0_1] : memref<16x128xf32, #tpu.memory_space<vmem>>, vector<16x128xf32>
    %c0_2 = arith.constant 0 : index
    %c0_3 = arith.constant 0 : index
    %4 = vector.load %arg7[%c0_2, %c0_3] : memref<128x1024xf32, #tpu.memory_space<vmem>>, vector<128x1024xf32>
    %cst = arith.constant dense<0.000000e+00> : vector<16x1024xf32>
    %5 = tpu.matmul %3, %4, %cst {dimension_numbers = #tpu.dot_dimension_numbers<[1], [0], [0], [1], [0, 0, 1, 1], [], []>} : vector<16x128xf32>, vector<128x1024xf32>, vector<16x1024xf32> -> vector<16x1024xf32>
    %c0_4 = arith.constant 0 : index
    %c0_5 = arith.constant 0 : index
    %6 = vector.load %arg8[%c0_4, %c0_5] : memref<1x1024xf32, #tpu.memory_space<vmem>>, vector<1x1024xf32>
    %7 = vector.broadcast %6 : vector<1x1024xf32> to vector<16x1024xf32>
    %8 = arith.addf %5, %7 : vector<16x1024xf32>
    %c0_6 = arith.constant 0 : index
    %c0_7 = arith.constant 0 : index
    %9 = vector.load %arg9[%c0_6, %c0_7] : memref<16x1024xf32, #tpu.memory_space<vmem>>, vector<16x1024xf32>
    tpu.vector_store %arg9[%c0_6, %c0_7], %8 {strides = array<i32>} : memref<16x1024xf32, #tpu.memory_space<vmem>>, vector<16x1024xf32>,
    return
  }
  func.func @transform_0(%arg0: i32, %arg1: i32) -> (i32, i32) {
    %c0_i32 = arith.constant 0 : i32
    %c0_i32_0 = arith.constant 0 : i32
    return %arg0, %c0_i32 : i32, i32
  }
  func.func @transform_1(%arg0: i32, %arg1: i32) -> (i32, i32) {
    %c0_i32 = arith.constant 0 : i32
    %c0_i32_0 = arith.constant 0 : i32
    %c0_i32_1 = arith.constant 0 : i32
    return %c0_i32, %c0_i32_0 : i32, i32
  }
  func.func @transform_2(%arg0: i32, %arg1: i32) -> (i32, i32) {
    %c0_i32 = arith.constant 0 : i32
    %c0_i32_0 = arith.constant 0 : i32
    %c0_i32_1 = arith.constant 0 : i32
    return %c0_i32, %c0_i32_0 : i32, i32
  }
  func.func @transform_3(%arg0: i32, %arg1: i32) -> (i32, i32) {
    %c0_i32 = arith.constant 0 : i32
    %c0_i32_0 = arith.constant 0 : i32
    %c0_i32_1 = arith.constant 0 : i32
    return %c0_i32, %c0_i32_0 : i32, i32
  }
  func.func @transform_4(%arg0: i32, %arg1: i32) -> (i32, i32) {
    %c0_i32 = arith.constant 0 : i32
    %c0_i32_0 = arith.constant 0 : i32
    %c0_i32_1 = arith.constant 0 : i32
    return %c0_i32, %c0_i32_0 : i32, i32
  }
  func.func @transform_5(%arg0: i32, %arg1: i32) -> (i32, i32) {
    %c0_i32 = arith.constant 0 : i32
    %c0_i32_0 = arith.constant 0 : i32
    return %c0_i32, %arg1 : i32, i32
  }
  func.func @transform_6(%arg0: i32, %arg1: i32) -> (i32, i32) {
    %c0_i32 = arith.constant 0 : i32
    %c0_i32_0 = arith.constant 0 : i32
    return %c0_i32, %arg1 : i32, i32
  }
  func.func @transform_7(%arg0: i32, %arg1: i32) -> (i32, i32) {
    %c0_i32 = arith.constant 0 : i32
    return %arg0, %arg1 : i32, i32
  }
}

</mosaic_0001>

<llo_original>
// kernel: tpu_custom_call.1
$region0: #{tpu_custom_call.1}
  #allocation0 [shape = 'u32[]', space=smem, size = 0x4, offset = 0x4, fixed_abs, tag = 'smem constant byte address 0x4 - core index']
  #allocation1 [shape = 'u32[72,128]{1,0:T(1,128)}', space=vmem, size = 0x9000, scoped, tag = 'internal scratch']
  #allocation2 [shape = 'f32[16,128]{1,0:T(8,128)}', space=vmem, size = 0x2000, scoped, tag = 'scratch operand']
  %s0 = inlined_call_operand.hbm [shape: f32[16,128], index: 0, kind: input, shape index: {}]
  %s1 = inlined_call_operand.hbm [shape: f32[128,128], index: 1, kind: input, shape index: {}]
  %s2 = inlined_call_operand.vmem [shape: f32[1,128], index: 2, kind: input, shape index: {}]
  %s3 = inlined_call_operand.vmem [shape: f32[1,128], index: 3, kind: input, shape index: {}]
  %s4 = inlined_call_operand.vmem [shape: f32[1,128], index: 4, kind: input, shape index: {}]
  %s5 = inlined_call_operand.hbm [shape: f32[128,1024], index: 5, kind: input, shape index: {}]
  %s6 = inlined_call_operand.hbm [shape: f32[1,1024], index: 6, kind: input, shape index: {}]
  %s7 = inlined_call_operand.hbm [shape: f32[16,1024], index: 7, kind: output, shape index: {}]
  %s8 = sld [smem:[#allocation0]]
  $region58: #{tpu_custom_call.1} parent=0
    _
  %s10 = ssub.s32 1, %s8
  %s11 = scalar_select 0, %s10, %s8
  $region1: #{tpu_custom_call.1} parent=0
    #allocation3 [shape = 'u8[8192]{0}', space=vmem, size = 0x2000, scoped, tag = 'input window, operand 0, single buffered']
    #allocation4 [shape = 's32[1]{0}', space=sflag, size = 0x4, scoped, tag = 'scoped memory for tpu_custom_call.1']
    #allocation5 [shape = 's32[1]{0}', space=sflag, size = 0x4, scoped, tag = 'scoped memory for tpu_custom_call.1']
    #allocation6 [shape = 'u8[65536]{0}', space=vmem, size = 0x10000, scoped, tag = 'input window, operand 1, single buffered']
    #allocation7 [shape = 's32[1]{0}', space=sflag, size = 0x4, scoped, tag = 'scoped memory for tpu_custom_call.1']
    #allocation8 [shape = 'u8[524288]{0}', space=vmem, size = 0x80000, scoped, tag = 'input window, operand 5, single buffered']
    #allocation9 [shape = 'u8[4096]{0}', space=vmem, size = 0x1000, scoped, tag = 'input window, operand 6, single buffered']
    #allocation10 [shape = 's32[1]{0}', space=sflag, size = 0x4, scoped, tag = 'scoped memory for tpu_custom_call.1']
    #allocation11 [shape = 'u8[65536]{0}', space=vmem, size = 0x10000, scoped, tag = 'output window, operand 0, single buffered']
    %12 = vsyncpa [#allocation4], 0
    %13 = vsyncpa [#allocation7], 0
    %14 = vsyncpa [#allocation10], 0
    %15 = vsyncpa [#allocation5], 0
    // Predicated region
    $region2: #{tpu_custom_call.1} parent=1 // pred_check
      _
    $region3: #{tpu_custom_call.1} parent=1 // pred_check_branch
      %17 = sbr.rel (0) target = $region5
    $region4: #{tpu_custom_call.1} parent=1 // pred_region
      %19 = vsyncadd [#allocation4], 0
      %s20 = sshll.u32 %s0, 4
      %s21 = int_to_ptr.hbm [resolvable:$true] %s20
      %s22 = sshll.u32 [#allocation3], 4
      %s23 = int_to_ptr.vmem [resolvable:$true] %s22
      %28 = dma.hbm_to_vmem [thread:$0]  %s21, 256, %s23, [#allocation4], 128, 128, 8
    $region5: #{tpu_custom_call.1} parent=1 // pred_fallthru
      _
    // Predicated region
    $region6: #{tpu_custom_call.1} parent=1 // pred_check
      _
    $region7: #{tpu_custom_call.1} parent=1 // pred_check_branch
      %30 = sbr.rel (0) target = $region9
    $region8: #{tpu_custom_call.1} parent=1 // pred_region
      %32 = vsyncadd [#allocation7], 0
      %s33 = sshll.u32 %s1, 4
      %s34 = int_to_ptr.hbm [resolvable:$true] %s33
      %s35 = sshll.u32 [#allocation6], 4
      %s36 = int_to_ptr.vmem [resolvable:$true] %s35
      %41 = dma.hbm_to_vmem [thread:$0]  %s34, 2048, %s36, [#allocation7], 128, 128, 8
    $region9: #{tpu_custom_call.1} parent=1 // pred_fallthru
      _
    // Predicated region
    $region10: #{tpu_custom_call.1} parent=1 // pred_check
      _
    $region11: #{tpu_custom_call.1} parent=1 // pred_check_branch
      %43 = sbr.rel (0) target = $region13
    $region12: #{tpu_custom_call.1} parent=1 // pred_region
      _
    $region13: #{tpu_custom_call.1} parent=1 // pred_fallthru
      _
    // Predicated region
    $region14: #{tpu_custom_call.1} parent=1 // pred_check
      _
    $region15: #{tpu_custom_call.1} parent=1 // pred_check_branch
      %45 = sbr.rel (0) target = $region17
    $region16: #{tpu_custom_call.1} parent=1 // pred_region
      _
    $region17: #{tpu_custom_call.1} parent=1 // pred_fallthru
      _
    // Predicated region
    $region18: #{tpu_custom_call.1} parent=1 // pred_check
      _
    $region19: #{tpu_custom_call.1} parent=1 // pred_check_branch
      %47 = sbr.rel (0) target = $region21
    $region20: #{tpu_custom_call.1} parent=1 // pred_region
      _
    $region21: #{tpu_custom_call.1} parent=1 // pred_fallthru
      _
    // Predicated region
    $region22: #{tpu_custom_call.1} parent=1 // pred_check
      _
    $region23: #{tpu_custom_call.1} parent=1 // pred_check_branch
      %49 = sbr.rel (0) target = $region25
    $region24: #{tpu_custom_call.1} parent=1 // pred_region
      %51 = vsyncadd [#allocation7], 0
      %s52 = sshll.u32 %s5, 4
      %s53 = int_to_ptr.hbm [resolvable:$true] %s52
      %s54 = sshll.u32 [#allocation8], 4
      %s55 = int_to_ptr.vmem [resolvable:$true] %s54
      %60 = dma.hbm_to_vmem [thread:$0]  %s53, 16384, %s55, [#allocation7], 1024, 1024, 64
    $region25: #{tpu_custom_call.1} parent=1 // pred_fallthru
      _
    // Predicated region
    $region26: #{tpu_custom_call.1} parent=1 // pred_check
      _
    $region27: #{tpu_custom_call.1} parent=1 // pred_check_branch
      %62 = sbr.rel (0) target = $region29
    $region28: #{tpu_custom_call.1} parent=1 // pred_region
      %64 = vsyncadd [#allocation10], 0
      %s66 = sshll.u32 %s6, 4
      %s67 = int_to_ptr.hbm [resolvable:$true] %s66
      %s68 = sshll.u32 [#allocation9], 4
      %s69 = int_to_ptr.vmem [resolvable:$true] %s68
      %71 = dma.hbm_to_vmem [thread:$0]  %s67, 128, %s69, [#allocation10]
    $region29: #{tpu_custom_call.1} parent=1 // pred_fallthru
      _
    // Predicated region
    $region30: #{tpu_custom_call.1} parent=1 // pred_check
      _
    $region31: #{tpu_custom_call.1} parent=1 // pred_check_branch
      %73 = sbr.rel (0) target = $region33
    $region32: #{tpu_custom_call.1} parent=1 // pred_region
      %75 = dma.done [#allocation4], 256
    $region33: #{tpu_custom_call.1} parent=1 // pred_fallthru
      _
    // Predicated region
    $region34: #{tpu_custom_call.1} parent=1 // pred_check
      _
    $region35: #{tpu_custom_call.1} parent=1 // pred_check_branch
      %77 = sbr.rel (0) target = $region37
    $region36: #{tpu_custom_call.1} parent=1 // pred_region
      %79 = dma.done [#allocation7], 2048
    $region37: #{tpu_custom_call.1} parent=1 // pred_fallthru
      _
    // Predicated region
    $region38: #{tpu_custom_call.1} parent=1 // pred_check
      _
    $region39: #{tpu_custom_call.1} parent=1 // pred_check_branch
      %81 = sbr.rel (0) target = $region41
    $region40: #{tpu_custom_call.1} parent=1 // pred_region
      %83 = dma.done [#allocation7], 16384
    $region41: #{tpu_custom_call.1} parent=1 // pred_fallthru
      _
    // Predicated region
    $region42: #{tpu_custom_call.1} parent=1 // pred_check
      _
    $region43: #{tpu_custom_call.1} parent=1 // pred_check_branch
      %85 = sbr.rel (0) target = $region45
    $region44: #{tpu_custom_call.1} parent=1 // pred_region
      %87 = dma.done [#allocation10], 128
    $region45: #{tpu_custom_call.1} parent=1 // pred_fallthru
      _
    %p88 = scmp.eq.s32.totalorder 0, 0
    // Predicated region
    $region46: #{tpu_custom_call.1} parent=1 // pred_check
      %p89 = pneg %p88
    $region47: #{tpu_custom_call.1} parent=1 // pred_check_branch
      %91 = sbr.rel (%p89) target = $region49
    $region48: #{tpu_custom_call.1} parent=1 // pred_region
      %v92 = vld [vmem:[#allocation3] sm:$0xff]
      %v93 = vld [vmem:[#allocation3 + $0x8] sm:$0xff]
      %v94 = vld [vmem:[#allocation6] sm:$0xff]
      %v95 = vld [vmem:[#allocation6 + $0x8] sm:$0xff]
      %v96 = vld [vmem:[#allocation6 + $0x10] sm:$0xff]
      %v97 = vld [vmem:[#allocation6 + $0x18] sm:$0xff]
      %v98 = vld [vmem:[#allocation6 + $0x20] sm:$0xff]
      %v99 = vld [vmem:[#allocation6 + $0x28] sm:$0xff]
      %v100 = vld [vmem:[#allocation6 + $0x30] sm:$0xff]
      %v101 = vld [vmem:[#allocation6 + $0x38] sm:$0xff]
      %v102 = vld [vmem:[#allocation6 + $0x40] sm:$0xff]
      %v103 = vld [vmem:[#allocation6 + $0x48] sm:$0xff]
      %v104 = vld [vmem:[#allocation6 + $0x50] sm:$0xff]
      %v105 = vld [vmem:[#allocation6 + $0x58] sm:$0xff]
      %v106 = vld [vmem:[#allocation6 + $0x60] sm:$0xff]
      %v107 = vld [vmem:[#allocation6 + $0x68] sm:$0xff]
      %v108 = vld [vmem:[#allocation6 + $0x70] sm:$0xff]
      %v109 = vld [vmem:[#allocation6 + $0x78] sm:$0xff]
      %v110 = vld [vmem:[%s2] sm:$0x1]
      %v112 = vperm.slane %v110, 0
      %114 = vmatpush.msra.mxu0 %v109
      %115 = vmatpush.msra.mxu0 %v108
      %116 = vmatpush.msra.mxu0 %v107
      %117 = vmatpush.msra.mxu0 %v106
      %118 = vmatpush.msra.mxu0 %v105
      %119 = vmatpush.msra.mxu0 %v104
      %120 = vmatpush.msra.mxu0 %v103
      %121 = vmatpush.msra.mxu0 %v102
      %122 = vmatpush.msra.mxu0 %v101
      %123 = vmatpush.msra.mxu0 %v100
      %124 = vmatpush.msra.mxu0 %v99
      %125 = vmatpush.msra.mxu0 %v98
      %126 = vmatpush.msra.mxu0 %v97
      %127 = vmatpush.msra.mxu0 %v96
      %128 = vmatpush.msra.mxu0 %v95
      %129 = vmatpush.msra.mxu0 %v94
      %130 = vmatmul.f32.gmra.mxu0 %v92
      %v131 = vpop.f32.mrf.mxu0
      %v132 = vadd.f32 %v112, %v131
      %133 = vmatmul.f32.gmra.mxu0 %v93
      %v134 = vpop.f32.mrf.mxu0
      %v135 = vadd.f32 %v112, %v134
      %136 = vdwg.mxu0
      %v137 = vmul.f32 %v132, 0.5
      %v138 = vmul.f32 %v135, 0.5
      %v139 = vmul.f32 %v132, 0.70710677
      %v140 = vmul.f32 %v135, 0.70710677
      %v141 = vand.u32 2147483647, %v139
      %v142 = vand.u32 2147483647, %v140
      %v143 = vmul.f32 %v141, 0.3275911
      %v144 = vmul.f32 %v142, 0.3275911
      %v145 = vadd.f32 %v143, 1.0
      %v146 = vadd.f32 %v144, 1.0
      %v147 = vrcp.pop %v145
      %v148 = vmul.f32 %v145, %v147
      %v149 = vsub.f32 1.0, %v148
      %v150 = vmul.f32 %v147, %v149
      %v151 = vadd.f32 %v147, %v150
      %vm152 = vweird.f32 %v145
      %vm153 = vweird.f32 %v147
      %vm154 = vmor %vm152, %vm153
      %v155 = vsel %vm154, %v147, %v151
      %v156 = vand.u32 2147483647, %v145
      %vm157 = vcmp.eq.f32.partialorder %v156, 8.507059e+37
      %v158 = vand.u32 %v145, 2147483648
      %v159 = vor.u32 1.1754944e-38, %v158
      %v160 = vsel %vm157, %v159, %v155
      %v161 = vmul.f32 1.0, %v160
      %v162 = vrcp.pop %v146
      %v163 = vmul.f32 %v146, %v162
      %v164 = vsub.f32 1.0, %v163
      %v165 = vmul.f32 %v162, %v164
      %v166 = vadd.f32 %v162, %v165
      %vm167 = vweird.f32 %v146
      %vm168 = vweird.f32 %v162
      %vm169 = vmor %vm167, %vm168
      %v170 = vsel %vm169, %v162, %v166
      %v171 = vand.u32 2147483647, %v146
      %vm172 = vcmp.eq.f32.partialorder %v171, 8.507059e+37
      %v173 = vand.u32 %v146, 2147483648
      %v174 = vor.u32 1.1754944e-38, %v173
      %v175 = vsel %vm172, %v174, %v170
      %v176 = vmul.f32 1.0, %v175
      %v177 = vmul.f32 %v161, 1.0614054
      %v178 = vmul.f32 %v176, 1.0614054
      %v179 = vadd.f32 %v177, -1.4531521
      %v180 = vadd.f32 %v178, -1.4531521
      %v181 = vmul.f32 %v161, %v179
      %v182 = vmul.f32 %v176, %v180
      %v183 = vadd.f32 %v181, 1.4214138
      %v184 = vadd.f32 %v182, 1.4214138
      %v185 = vmul.f32 %v161, %v183
      %v186 = vmul.f32 %v176, %v184
      %v187 = vadd.f32 %v185, -0.28449672
      %v188 = vadd.f32 %v186, -0.28449672
      %v189 = vmul.f32 %v161, %v187
      %v190 = vmul.f32 %v176, %v188
      %v191 = vadd.f32 %v189, 0.2548296
      %v192 = vadd.f32 %v190, 0.2548296
      %v193 = vmul.f32 %v161, %v191
      %v194 = vmul.f32 %v176, %v192
      %v195 = vmul.f32 %v141, %v141
      %v196 = vmul.f32 %v142, %v142
      %v197 = vsub.f32 0.0, %v195
      %v198 = vsub.f32 0.0, %v196
      %v199 = vmul.f32 %v197, 1.442695
      %v200 = vpow.pop %v199
      %v201 = vmul.f32 %v198, 1.442695
      %v202 = vpow.pop %v201
      %v203 = vmul.f32 %v193, %v200
      %v204 = vmul.f32 %v194, %v202
      %v205 = vsub.f32 1.0, %v203
      %v206 = vsub.f32 1.0, %v204
      %vm207 = vcmp.lt.f32.partialorder %v139, 0.0
      %vm208 = vcmp.lt.f32.partialorder %v140, 0.0
      %v209 = vsub.f32 0.0, %v205
      %v210 = vsub.f32 0.0, %v206
      %v211 = vsel %vm207, %v209, %v205
      %v212 = vsel %vm208, %v210, %v206
      %v213 = vadd.f32 %v211, 1.0
      %v214 = vadd.f32 %v212, 1.0
      %v215 = vmul.f32 %v137, %v213
      %v216 = vmul.f32 %v138, %v214
      %217 = vadd.xlane.f32.xlu0 %v215
      %v218 = vpop.xlane.xlu0 %217
      %219 = vadd.xlane.f32.xlu0 %v216
      %v220 = vpop.xlane.xlu0 %219
      %v221 = vrcp.pop 128.0
      %v222 = vmul.f32 128.0, %v221
      %v223 = vsub.f32 1.0, %v222
      %v224 = vmul.f32 %v221, %v223
      %v225 = vadd.f32 %v221, %v224
      %vm226 = vweird.f32 %v221
      %v227 = vsel %vm226, %v221, %v225
      %v228 = vmul.f32 %v218, %v227
      %v229 = vmul.f32 %v220, %v227
      %v230 = vsub.f32 %v215, %v228
      %v231 = vsub.f32 %v216, %v229
      %v232 = vmul.f32 %v230, %v230
      %v233 = vmul.f32 %v231, %v231
      %234 = vadd.xlane.f32.xlu0 %v232
      %v235 = vpop.xlane.xlu0 %234
      %236 = vadd.xlane.f32.xlu0 %v233
      %v237 = vpop.xlane.xlu0 %236
      %v238 = vmul.f32 %v235, %v227
      %v239 = vmul.f32 %v237, %v227
      %v240 = vadd.f32 %v238, 1e-05
      %v241 = vadd.f32 %v239, 1e-05
      %v242 = vrsqrt.pop %v240
      %v243 = vmul.f32 %v242, %v240
      %v244 = vmul.f32 %v243, %v242
      %v245 = vmul.f32 0.5, %v244
      %v246 = vsub.f32 1.5, %v245
      %v247 = vmul.f32 %v242, %v246
      %vm248 = vweird.f32 %v240
      %vm249 = vweird.f32 %v242
      %vm250 = vmor %vm248, %vm249
      %v251 = vsel %vm250, %v242, %v247
      %v252 = vrsqrt.pop %v241
      %v253 = vmul.f32 %v252, %v241
      %v254 = vmul.f32 %v253, %v252
      %v255 = vmul.f32 0.5, %v254
      %v256 = vsub.f32 1.5, %v255
      %v257 = vmul.f32 %v252, %v256
      %vm258 = vweird.f32 %v241
      %vm259 = vweird.f32 %v252
      %vm260 = vmor %vm258, %vm259
      %v261 = vsel %vm260, %v252, %v257
      %v262 = vmul.f32 %v230, %v251
      %v263 = vmul.f32 %v231, %v261
      %v264 = vld [vmem:[%s3] sm:$0x1]
      %v266 = vperm.slane %v264, 0
      %v268 = vmul.f32 %v262, %v266
      %v269 = vmul.f32 %v263, %v266
      %v270 = vld [vmem:[%s4] sm:$0x1]
      %v272 = vperm.slane %v270, 0
      %v274 = vadd.f32 %v268, %v272
      %v275 = vadd.f32 %v269, %v272
      %276 = vst [vmem:[#allocation2] sm:$0xff] %v274
      %277 = vst [vmem:[#allocation2 + $0x8] sm:$0xff] %v275
    $region49: #{tpu_custom_call.1} parent=1 // pred_fallthru
      _
    %v278 = vld [vmem:[#allocation2] sm:$0xff]
    %v279 = vld [vmem:[#allocation2 + $0x8] sm:$0xff]
    %v280 = vld [vmem:[#allocation8] sm:$0xff]
    %v281 = vld [vmem:[#allocation8 + $0x8] sm:$0xff]
    %v282 = vld [vmem:[#allocation8 + $0x10] sm:$0xff]
    %v283 = vld [vmem:[#allocation8 + $0x18] sm:$0xff]
    %v284 = vld [vmem:[#allocation8 + $0x20] sm:$0xff]
    %v285 = vld [vmem:[#allocation8 + $0x28] sm:$0xff]
    %v286 = vld [vmem:[#allocation8 + $0x30] sm:$0xff]
    %v287 = vld [vmem:[#allocation8 + $0x38] sm:$0xff]
    %v288 = vld [vmem:[#allocation8 + $0x40] sm:$0xff]
    %v289 = vld [vmem:[#allocation8 + $0x48] sm:$0xff]
    %v290 = vld [vmem:[#allocation8 + $0x50] sm:$0xff]
    %v291 = vld [vmem:[#allocation8 + $0x58] sm:$0xff]
    %v292 = vld [vmem:[#allocation8 + $0x60] sm:$0xff]
    %v293 = vld [vmem:[#allocation8 + $0x68] sm:$0xff]
    %v294 = vld [vmem:[#allocation8 + $0x70] sm:$0xff]
    %v295 = vld [vmem:[#allocation8 + $0x78] sm:$0xff]
    %v296 = vld [vmem:[#allocation8 + $0x80] sm:$0xff]
    %v297 = vld [vmem:[#allocation8 + $0x88] sm:$0xff]
    %v298 = vld [vmem:[#allocation8 + $0x90] sm:$0xff]
    %v299 = vld [vmem:[#allocation8 + $0x98] sm:$0xff]
    %v300 = vld [vmem:[#allocation8 + $0xa0] sm:$0xff]
    %v301 = vld [vmem:[#allocation8 + $0xa8] sm:$0xff]
    %v302 = vld [vmem:[#allocation8 + $0xb0] sm:$0xff]
    %v303 = vld [vmem:[#allocation8 + $0xb8] sm:$0xff]
    %v304 = vld [vmem:[#allocation8 + $0xc0] sm:$0xff]
    %v305 = vld [vmem:[#allocation8 + $0xc8] sm:$0xff]
    %v306 = vld [vmem:[#allocation8 + $0xd0] sm:$0xff]
    %v307 = vld [vmem:[#allocation8 + $0xd8] sm:$0xff]
    %v308 = vld [vmem:[#allocation8 + $0xe0] sm:$0xff]
    %v309 = vld [vmem:[#allocation8 + $0xe8] sm:$0xff]
    %v310 = vld [vmem:[#allocation8 + $0xf0] sm:$0xff]
    %v311 = vld [vmem:[#allocation8 + $0xf8] sm:$0xff]
    %v312 = vld [vmem:[#allocation8 + $0x100] sm:$0xff]
    %v313 = vld [vmem:[#allocation8 + $0x108] sm:$0xff]
    %v314 = vld [vmem:[#allocation8 + $0x110] sm:$0xff]
    %v315 = vld [vmem:[#allocation8 + $0x118] sm:$0xff]
    %v316 = vld [vmem:[#allocation8 + $0x120] sm:$0xff]
    %v317 = vld [vmem:[#allocation8 + $0x128] sm:$0xff]
    %v318 = vld [vmem:[#allocation8 + $0x130] sm:$0xff]
    %v319 = vld [vmem:[#allocation8 + $0x138] sm:$0xff]
    %v320 = vld [vmem:[#allocation8 + $0x140] sm:$0xff]
    %v321 = vld [vmem:[#allocation8 + $0x148] sm:$0xff]
    %v322 = vld [vmem:[#allocation8 + $0x150] sm:$0xff]
    %v323 = vld [vmem:[#allocation8 + $0x158] sm:$0xff]
    %v324 = vld [vmem:[#allocation8 + $0x160] sm:$0xff]
    %v325 = vld [vmem:[#allocation8 + $0x168] sm:$0xff]
    %v326 = vld [vmem:[#allocation8 + $0x170] sm:$0xff]
    %v327 = vld [vmem:[#allocation8 + $0x178] sm:$0xff]
    %v328 = vld [vmem:[#allocation8 + $0x180] sm:$0xff]
    %v329 = vld [vmem:[#allocation8 + $0x188] sm:$0xff]
    %v330 = vld [vmem:[#allocation8 + $0x190] sm:$0xff]
    %v331 = vld [vmem:[#allocation8 + $0x198] sm:$0xff]
    %v332 = vld [vmem:[#allocation8 + $0x1a0] sm:$0xff]
    %v333 = vld [vmem:[#allocation8 + $0x1a8] sm:$0xff]
    %v334 = vld [vmem:[#allocation8 + $0x1b0] sm:$0xff]
    %v335 = vld [vmem:[#allocation8 + $0x1b8] sm:$0xff]
    %v336 = vld [vmem:[#allocation8 + $0x1c0] sm:$0xff]
    %v337 = vld [vmem:[#allocation8 + $0x1c8] sm:$0xff]
    %v338 = vld [vmem:[#allocation8 + $0x1d0] sm:$0xff]
    %v339 = vld [vmem:[#allocation8 + $0x1d8] sm:$0xff]
    %v340 = vld [vmem:[#allocation8 + $0x1e0] sm:$0xff]
    %v341 = vld [vmem:[#allocation8 + $0x1e8] sm:$0xff]
    %v342 = vld [vmem:[#allocation8 + $0x1f0] sm:$0xff]
    %v343 = vld [vmem:[#allocation8 + $0x1f8] sm:$0xff]
    %v344 = vld [vmem:[#allocation8 + $0x200] sm:$0xff]
    %v345 = vld [vmem:[#allocation8 + $0x208] sm:$0xff]
    %v346 = vld [vmem:[#allocation8 + $0x210] sm:$0xff]
    %v347 = vld [vmem:[#allocation8 + $0x218] sm:$0xff]
    %v348 = vld [vmem:[#allocation8 + $0x220] sm:$0xff]
    %v349 = vld [vmem:[#allocation8 + $0x228] sm:$0xff]
    %v350 = vld [vmem:[#allocation8 + $0x230] sm:$0xff]
    %v351 = vld [vmem:[#allocation8 + $0x238] sm:$0xff]
    %v352 = vld [vmem:[#allocation8 + $0x240] sm:$0xff]
    %v353 = vld [vmem:[#allocation8 + $0x248] sm:$0xff]
    %v354 = vld [vmem:[#allocation8 + $0x250] sm:$0xff]
    %v355 = vld [vmem:[#allocation8 + $0x258] sm:$0xff]
    %v356 = vld [vmem:[#allocation8 + $0x260] sm:$0xff]
    %v357 = vld [vmem:[#allocation8 + $0x268] sm:$0xff]
    %v358 = vld [vmem:[#allocation8 + $0x270] sm:$0xff]
    %v359 = vld [vmem:[#allocation8 + $0x278] sm:$0xff]
    %v360 = vld [vmem:[#allocation8 + $0x280] sm:$0xff]
    %v361 = vld [vmem:[#allocation8 + $0x288] sm:$0xff]
    %v362 = vld [vmem:[#allocation8 + $0x290] sm:$0xff]
    %v363 = vld [vmem:[#allocation8 + $0x298] sm:$0xff]
    %v364 = vld [vmem:[#allocation8 + $0x2a0] sm:$0xff]
    %v365 = vld [vmem:[#allocation8 + $0x2a8] sm:$0xff]
    %v366 = vld [vmem:[#allocation8 + $0x2b0] sm:$0xff]
    %v367 = vld [vmem:[#allocation8 + $0x2b8] sm:$0xff]
    %v368 = vld [vmem:[#allocation8 + $0x2c0] sm:$0xff]
    %v369 = vld [vmem:[#allocation8 + $0x2c8] sm:$0xff]
    %v370 = vld [vmem:[#allocation8 + $0x2d0] sm:$0xff]
    %v371 = vld [vmem:[#allocation8 + $0x2d8] sm:$0xff]
    %v372 = vld [vmem:[#allocation8 + $0x2e0] sm:$0xff]
    %v373 = vld [vmem:[#allocation8 + $0x2e8] sm:$0xff]
    %v374 = vld [vmem:[#allocation8 + $0x2f0] sm:$0xff]
    %v375 = vld [vmem:[#allocation8 + $0x2f8] sm:$0xff]
    %v376 = vld [vmem:[#allocation8 + $0x300] sm:$0xff]
    %v377 = vld [vmem:[#allocation8 + $0x308] sm:$0xff]
    %v378 = vld [vmem:[#allocation8 + $0x310] sm:$0xff]
    %v379 = vld [vmem:[#allocation8 + $0x318] sm:$0xff]
    %v380 = vld [vmem:[#allocation8 + $0x320] sm:$0xff]
    %v381 = vld [vmem:[#allocation8 + $0x328] sm:$0xff]
    %v382 = vld [vmem:[#allocation8 + $0x330] sm:$0xff]
    %v383 = vld [vmem:[#allocation8 + $0x338] sm:$0xff]
    %v384 = vld [vmem:[#allocation8 + $0x340] sm:$0xff]
    %v385 = vld [vmem:[#allocation8 + $0x348] sm:$0xff]
    %v386 = vld [vmem:[#allocation8 + $0x350] sm:$0xff]
    %v387 = vld [vmem:[#allocation8 + $0x358] sm:$0xff]
    %v388 = vld [vmem:[#allocation8 + $0x360] sm:$0xff]
    %v389 = vld [vmem:[#allocation8 + $0x368] sm:$0xff]
    %v390 = vld [vmem:[#allocation8 + $0x370] sm:$0xff]
    %v391 = vld [vmem:[#allocation8 + $0x378] sm:$0xff]
    %v392 = vld [vmem:[#allocation8 + $0x380] sm:$0xff]
    %v393 = vld [vmem:[#allocation8 + $0x388] sm:$0xff]
    %v394 = vld [vmem:[#allocation8 + $0x390] sm:$0xff]
    %v395 = vld [vmem:[#allocation8 + $0x398] sm:$0xff]
    %v396 = vld [vmem:[#allocation8 + $0x3a0] sm:$0xff]
    %v397 = vld [vmem:[#allocation8 + $0x3a8] sm:$0xff]
    %v398 = vld [vmem:[#allocation8 + $0x3b0] sm:$0xff]
    %v399 = vld [vmem:[#allocation8 + $0x3b8] sm:$0xff]
    %v400 = vld [vmem:[#allocation8 + $0x3c0] sm:$0xff]
    %v401 = vld [vmem:[#allocation8 + $0x3c8] sm:$0xff]
    %v402 = vld [vmem:[#allocation8 + $0x3d0] sm:$0xff]
    %v403 = vld [vmem:[#allocation8 + $0x3d8] sm:$0xff]
    %v404 = vld [vmem:[#allocation8 + $0x3e0] sm:$0xff]
    %v405 = vld [vmem:[#allocation8 + $0x3e8] sm:$0xff]
    %v406 = vld [vmem:[#allocation8 + $0x3f0] sm:$0xff]
    %v407 = vld [vmem:[#allocation8 + $0x3f8] sm:$0xff]
    %v408 = vld [vmem:[#allocation9] sm:$0xff]
    %v410 = vperm.slane %v408, 0
    %v411 = vperm.slane %v408, 1
    %v412 = vperm.slane %v408, 2
    %v413 = vperm.slane %v408, 3
    %v414 = vperm.slane %v408, 4
    %v415 = vperm.slane %v408, 5
    %v416 = vperm.slane %v408, 6
    %v417 = vperm.slane %v408, 7
    %426 = vmatpush.msra.mxu0 %v400
    %427 = vmatpush.msra.mxu0 %v392
    %428 = vmatpush.msra.mxu0 %v384
    %429 = vmatpush.msra.mxu0 %v376
    %430 = vmatpush.msra.mxu0 %v368
    %431 = vmatpush.msra.mxu0 %v360
    %432 = vmatpush.msra.mxu0 %v352
    %433 = vmatpush.msra.mxu0 %v344
    %434 = vmatpush.msra.mxu0 %v336
    %435 = vmatpush.msra.mxu0 %v328
    %436 = vmatpush.msra.mxu0 %v320
    %437 = vmatpush.msra.mxu0 %v312
    %438 = vmatpush.msra.mxu0 %v304
    %439 = vmatpush.msra.mxu0 %v296
    %440 = vmatpush.msra.mxu0 %v288
    %441 = vmatpush.msra.mxu0 %v280
    %442 = vmatmul.f32.gmra.mxu0 %v278
    %v443 = vpop.f32.mrf.mxu0
    %v444 = vadd.f32 %v410, %v443
    %445 = vmatmul.f32.gmra.mxu0 %v279
    %v446 = vpop.f32.mrf.mxu0
    %v447 = vadd.f32 %v410, %v446
    %448 = vdwg.mxu0
    %449 = vmatpush.msra.mxu0 %v401
    %450 = vmatpush.msra.mxu0 %v393
    %451 = vmatpush.msra.mxu0 %v385
    %452 = vmatpush.msra.mxu0 %v377
    %453 = vmatpush.msra.mxu0 %v369
    %454 = vmatpush.msra.mxu0 %v361
    %455 = vmatpush.msra.mxu0 %v353
    %456 = vmatpush.msra.mxu0 %v345
    %457 = vmatpush.msra.mxu0 %v337
    %458 = vmatpush.msra.mxu0 %v329
    %459 = vmatpush.msra.mxu0 %v321
    %460 = vmatpush.msra.mxu0 %v313
    %461 = vmatpush.msra.mxu0 %v305
    %462 = vmatpush.msra.mxu0 %v297
    %463 = vmatpush.msra.mxu0 %v289
    %464 = vmatpush.msra.mxu0 %v281
    %465 = vmatmul.f32.gmra.mxu0 %v278
    %v466 = vpop.f32.mrf.mxu0
    %v467 = vadd.f32 %v411, %v466
    %468 = vmatmul.f32.gmra.mxu0 %v279
    %v469 = vpop.f32.mrf.mxu0
    %v470 = vadd.f32 %v411, %v469
    %471 = vdwg.mxu0
    %472 = vmatpush.msra.mxu0 %v402
    %473 = vmatpush.msra.mxu0 %v394
    %474 = vmatpush.msra.mxu0 %v386
    %475 = vmatpush.msra.mxu0 %v378
    %476 = vmatpush.msra.mxu0 %v370
    %477 = vmatpush.msra.mxu0 %v362
    %478 = vmatpush.msra.mxu0 %v354
    %479 = vmatpush.msra.mxu0 %v346
    %480 = vmatpush.msra.mxu0 %v338
    %481 = vmatpush.msra.mxu0 %v330
    %482 = vmatpush.msra.mxu0 %v322
    %483 = vmatpush.msra.mxu0 %v314
    %484 = vmatpush.msra.mxu0 %v306
    %485 = vmatpush.msra.mxu0 %v298
    %486 = vmatpush.msra.mxu0 %v290
    %487 = vmatpush.msra.mxu0 %v282
    %488 = vmatmul.f32.gmra.mxu0 %v278
    %v489 = vpop.f32.mrf.mxu0
    %v490 = vadd.f32 %v412, %v489
    %491 = vmatmul.f32.gmra.mxu0 %v279
    %v492 = vpop.f32.mrf.mxu0
    %v493 = vadd.f32 %v412, %v492
    %494 = vdwg.mxu0
    %495 = vmatpush.msra.mxu0 %v403
    %496 = vmatpush.msra.mxu0 %v395
    %497 = vmatpush.msra.mxu0 %v387
    %498 = vmatpush.msra.mxu0 %v379
    %499 = vmatpush.msra.mxu0 %v371
    %500 = vmatpush.msra.mxu0 %v363
    %501 = vmatpush.msra.mxu0 %v355
    %502 = vmatpush.msra.mxu0 %v347
    %503 = vmatpush.msra.mxu0 %v339
    %504 = vmatpush.msra.mxu0 %v331
    %505 = vmatpush.msra.mxu0 %v323
    %506 = vmatpush.msra.mxu0 %v315
    %507 = vmatpush.msra.mxu0 %v307
    %508 = vmatpush.msra.mxu0 %v299
    %509 = vmatpush.msra.mxu0 %v291
    %510 = vmatpush.msra.mxu0 %v283
    %511 = vmatmul.f32.gmra.mxu0 %v278
    %v512 = vpop.f32.mrf.mxu0
    %v513 = vadd.f32 %v413, %v512
    %514 = vmatmul.f32.gmra.mxu0 %v279
    %v515 = vpop.f32.mrf.mxu0
    %v516 = vadd.f32 %v413, %v515
    %517 = vdwg.mxu0
    %518 = vmatpush.msra.mxu0 %v404
    %519 = vmatpush.msra.mxu0 %v396
    %520 = vmatpush.msra.mxu0 %v388
    %521 = vmatpush.msra.mxu0 %v380
    %522 = vmatpush.msra.mxu0 %v372
    %523 = vmatpush.msra.mxu0 %v364
    %524 = vmatpush.msra.mxu0 %v356
    %525 = vmatpush.msra.mxu0 %v348
    %526 = vmatpush.msra.mxu0 %v340
    %527 = vmatpush.msra.mxu0 %v332
    %528 = vmatpush.msra.mxu0 %v324
    %529 = vmatpush.msra.mxu0 %v316
    %530 = vmatpush.msra.mxu0 %v308
    %531 = vmatpush.msra.mxu0 %v300
    %532 = vmatpush.msra.mxu0 %v292
    %533 = vmatpush.msra.mxu0 %v284
    %534 = vmatmul.f32.gmra.mxu0 %v278
    %v535 = vpop.f32.mrf.mxu0
    %v536 = vadd.f32 %v414, %v535
    %537 = vmatmul.f32.gmra.mxu0 %v279
    %v538 = vpop.f32.mrf.mxu0
    %v539 = vadd.f32 %v414, %v538
    %540 = vdwg.mxu0
    %541 = vmatpush.msra.mxu0 %v405
    %542 = vmatpush.msra.mxu0 %v397
    %543 = vmatpush.msra.mxu0 %v389
    %544 = vmatpush.msra.mxu0 %v381
    %545 = vmatpush.msra.mxu0 %v373
    %546 = vmatpush.msra.mxu0 %v365
    %547 = vmatpush.msra.mxu0 %v357
    %548 = vmatpush.msra.mxu0 %v349
    %549 = vmatpush.msra.mxu0 %v341
    %550 = vmatpush.msra.mxu0 %v333
    %551 = vmatpush.msra.mxu0 %v325
    %552 = vmatpush.msra.mxu0 %v317
    %553 = vmatpush.msra.mxu0 %v309
    %554 = vmatpush.msra.mxu0 %v301
    %555 = vmatpush.msra.mxu0 %v293
    %556 = vmatpush.msra.mxu0 %v285
    %557 = vmatmul.f32.gmra.mxu0 %v278
    %v558 = vpop.f32.mrf.mxu0
    %v559 = vadd.f32 %v415, %v558
    %560 = vmatmul.f32.gmra.mxu0 %v279
    %v561 = vpop.f32.mrf.mxu0
    %v562 = vadd.f32 %v415, %v561
    %563 = vdwg.mxu0
    %564 = vmatpush.msra.mxu0 %v406
    %565 = vmatpush.msra.mxu0 %v398
    %566 = vmatpush.msra.mxu0 %v390
    %567 = vmatpush.msra.mxu0 %v382
    %568 = vmatpush.msra.mxu0 %v374
    %569 = vmatpush.msra.mxu0 %v366
    %570 = vmatpush.msra.mxu0 %v358
    %571 = vmatpush.msra.mxu0 %v350
    %572 = vmatpush.msra.mxu0 %v342
    %573 = vmatpush.msra.mxu0 %v334
    %574 = vmatpush.msra.mxu0 %v326
    %575 = vmatpush.msra.mxu0 %v318
    %576 = vmatpush.msra.mxu0 %v310
    %577 = vmatpush.msra.mxu0 %v302
    %578 = vmatpush.msra.mxu0 %v294
    %579 = vmatpush.msra.mxu0 %v286
    %580 = vmatmul.f32.gmra.mxu0 %v278
    %v581 = vpop.f32.mrf.mxu0
    %v582 = vadd.f32 %v416, %v581
    %583 = vmatmul.f32.gmra.mxu0 %v279
    %v584 = vpop.f32.mrf.mxu0
    %v585 = vadd.f32 %v416, %v584
    %586 = vdwg.mxu0
    %587 = vmatpush.msra.mxu0 %v407
    %588 = vmatpush.msra.mxu0 %v399
    %589 = vmatpush.msra.mxu0 %v391
    %590 = vmatpush.msra.mxu0 %v383
    %591 = vmatpush.msra.mxu0 %v375
    %592 = vmatpush.msra.mxu0 %v367
    %593 = vmatpush.msra.mxu0 %v359
    %594 = vmatpush.msra.mxu0 %v351
    %595 = vmatpush.msra.mxu0 %v343
    %596 = vmatpush.msra.mxu0 %v335
    %597 = vmatpush.msra.mxu0 %v327
    %598 = vmatpush.msra.mxu0 %v319
    %599 = vmatpush.msra.mxu0 %v311
    %600 = vmatpush.msra.mxu0 %v303
    %601 = vmatpush.msra.mxu0 %v295
    %602 = vmatpush.msra.mxu0 %v287
    %603 = vmatmul.f32.gmra.mxu0 %v278
    %v604 = vpop.f32.mrf.mxu0
    %v605 = vadd.f32 %v417, %v604
    %606 = vmatmul.f32.gmra.mxu0 %v279
    %v607 = vpop.f32.mrf.mxu0
    %v608 = vadd.f32 %v417, %v607
    %609 = vdwg.mxu0
    %610 = vst [vmem:[#allocation11] sm:$0xff] %v444
    %611 = vst [vmem:[#allocation11 + $0x8] sm:$0xff] %v467
    %612 = vst [vmem:[#allocation11 + $0x10] sm:$0xff] %v490
    %613 = vst [vmem:[#allocation11 + $0x18] sm:$0xff] %v513
    %614 = vst [vmem:[#allocation11 + $0x20] sm:$0xff] %v536
    %615 = vst [vmem:[#allocation11 + $0x28] sm:$0xff] %v559
    %616 = vst [vmem:[#allocation11 + $0x30] sm:$0xff] %v582
    %617 = vst [vmem:[#allocation11 + $0x38] sm:$0xff] %v605
    %618 = vst [vmem:[#allocation11 + $0x40] sm:$0xff] %v447
    %619 = vst [vmem:[#allocation11 + $0x48] sm:$0xff] %v470
    %620 = vst [vmem:[#allocation11 + $0x50] sm:$0xff] %v493
    %621 = vst [vmem:[#allocation11 + $0x58] sm:$0xff] %v516
    %622 = vst [vmem:[#allocation11 + $0x60] sm:$0xff] %v539
    %623 = vst [vmem:[#allocation11 + $0x68] sm:$0xff] %v562
    %624 = vst [vmem:[#allocation11 + $0x70] sm:$0xff] %v585
    %625 = vst [vmem:[#allocation11 + $0x78] sm:$0xff] %v608
    // Predicated region
    $region50: #{tpu_custom_call.1} parent=1 // pred_check
      _
    $region51: #{tpu_custom_call.1} parent=1 // pred_check_branch
      %627 = sbr.rel (0) target = $region53
    $region52: #{tpu_custom_call.1} parent=1 // pred_region
      %629 = vsyncadd [#allocation5], 0
      %s630 = sshll.u32 [#allocation11], 4
      %s631 = int_to_ptr.vmem [resolvable:$true] %s630
      %s632 = sshll.u32 %s7, 4
      %s633 = int_to_ptr.hbm [resolvable:$true] %s632
      %638 = dma.vmem_to_hbm [thread:$0]  %s631, 2048, %s633, [#allocation5], 1024, 1024, 64
    $region53: #{tpu_custom_call.1} parent=1 // pred_fallthru
      _
    // Predicated region
    $region54: #{tpu_custom_call.1} parent=1 // pred_check
      _
    $region55: #{tpu_custom_call.1} parent=1 // pred_check_branch
      %640 = sbr.rel (0) target = $region57
    $region56: #{tpu_custom_call.1} parent=1 // pred_region
      %642 = dma.done [#allocation5], 2048
    $region57: #{tpu_custom_call.1} parent=1 // pred_fallthru
      _
    %643 = vsyncpa [#allocation4], 1
    %644 = vsyncpa [#allocation7], 1
    %645 = vsyncpa [#allocation10], 1
    %646 = vsyncpa [#allocation5], 1

// kernel: tpu_custom_call.1
$region0: #{tpu_custom_call.1}
  #allocation0 [shape = 'u32[]', space=smem, size = 0x4, offset = 0x4, fixed_abs, tag = 'smem constant byte address 0x4 - core index']
  #allocation1 [shape = 'u32[72,128]{1,0:T(1,128)}', space=vmem, size = 0x9000, scoped, tag = 'internal scratch']
  #allocation2 [shape = 'f32[16,128]{1,0:T(8,128)}', space=vmem, size = 0x2000, scoped, tag = 'scratch operand']
  %s0 = inlined_call_operand.hbm [shape: f32[16,128], index: 0, kind: input, shape index: {}]
  %s1 = inlined_call_operand.hbm [shape: f32[128,128], index: 1, kind: input, shape index: {}]
  %s2 = inlined_call_operand.vmem [shape: f32[1,128], index: 2, kind: input, shape index: {}]
  %s3 = inlined_call_operand.vmem [shape: f32[1,128], index: 3, kind: input, shape index: {}]
  %s4 = inlined_call_operand.vmem [shape: f32[1,128], index: 4, kind: input, shape index: {}]
  %s5 = inlined_call_operand.hbm [shape: f32[128,1024], index: 5, kind: input, shape index: {}]
  %s6 = inlined_call_operand.hbm [shape: f32[1,1024], index: 6, kind: input, shape index: {}]
  %s7 = inlined_call_operand.hbm [shape: f32[16,1024], index: 7, kind: output, shape index: {}]
  %s8 = sld [smem:[#allocation0]]
  $region58: #{tpu_custom_call.1} parent=0
    _
  %s10 = ssub.s32 1, %s8
  %s11 = scalar_select 0, %s10, %s8
  $region1: #{tpu_custom_call.1} parent=0
    #allocation3 [shape = 'u8[8192]{0}', space=vmem, size = 0x2000, scoped, tag = 'input window, operand 0, single buffered']
    #allocation4 [shape = 's32[1]{0}', space=sflag, size = 0x4, scoped, tag = 'scoped memory for tpu_custom_call.1']
    #allocation5 [shape = 's32[1]{0}', space=sflag, size = 0x4, scoped, tag = 'scoped memory for tpu_custom_call.1']
    #allocation6 [shape = 'u8[65536]{0}', space=vmem, size = 0x10000, scoped, tag = 'input window, operand 1, single buffered']
    #allocation7 [shape = 's32[1]{0}', space=sflag, size = 0x4, scoped, tag = 'scoped memory for tpu_custom_call.1']
    #allocation8 [shape = 'u8[524288]{0}', space=vmem, size = 0x80000, scoped, tag = 'input window, operand 5, single buffered']
    #allocation9 [shape = 'u8[4096]{0}', space=vmem, size = 0x1000, scoped, tag = 'input window, operand 6, single buffered']
    #allocation10 [shape = 's32[1]{0}', space=sflag, size = 0x4, scoped, tag = 'scoped memory for tpu_custom_call.1']
    #allocation11 [shape = 'u8[65536]{0}', space=vmem, size = 0x10000, scoped, tag = 'output window, operand 0, single buffered']
    %12 = vsyncpa [#allocation4], 0
    %13 = vsyncpa [#allocation7], 0
    %14 = vsyncpa [#allocation10], 0
    %15 = vsyncpa [#allocation5], 0
    // Predicated region
    $region2: #{tpu_custom_call.1} parent=1 // pred_check
      _
    $region3: #{tpu_custom_call.1} parent=1 // pred_check_branch
      %17 = sbr.rel (0) target = $region5
    $region4: #{tpu_custom_call.1} parent=1 // pred_region
      %19 = vsyncadd [#allocation4], 0
      %s20 = sshll.u32 %s0, 4
      %s21 = int_to_ptr.hbm [resolvable:$true] %s20
      %s22 = sshll.u32 [#allocation3], 4
      %s23 = int_to_ptr.vmem [resolvable:$true] %s22
      %28 = dma.hbm_to_vmem [thread:$0]  %s21, 256, %s23, [#allocation4], 128, 128, 8
    $region5: #{tpu_custom_call.1} parent=1 // pred_fallthru
      _
    // Predicated region
    $region6: #{tpu_custom_call.1} parent=1 // pred_check
      _
    $region7: #{tpu_custom_call.1} parent=1 // pred_check_branch
      %30 = sbr.rel (0) target = $region9
    $region8: #{tpu_custom_call.1} parent=1 // pred_region
      %32 = vsyncadd [#allocation7], 0
      %s33 = sshll.u32 %s1, 4
      %s34 = int_to_ptr.hbm [resolvable:$true] %s33
      %s35 = sshll.u32 [#allocation6], 4
      %s36 = int_to_ptr.vmem [resolvable:$true] %s35
      %41 = dma.hbm_to_vmem [thread:$0]  %s34, 2048, %s36, [#allocation7], 128, 128, 8
    $region9: #{tpu_custom_call.1} parent=1 // pred_fallthru
      _
    // Predicated region
    $region10: #{tpu_custom_call.1} parent=1 // pred_check
      _
    $region11: #{tpu_custom_call.1} parent=1 // pred_check_branch
      %43 = sbr.rel (0) target = $region13
    $region12: #{tpu_custom_call.1} parent=1 // pred_region
      _
    $region13: #{tpu_custom_call.1} parent=1 // pred_fallthru
      _
    // Predicated region
    $region14: #{tpu_custom_call.1} parent=1 // pred_check
      _
    $region15: #{tpu_custom_call.1} parent=1 // pred_check_branch
      %45 = sbr.rel (0) target = $region17
    $region16: #{tpu_custom_call.1} parent=1 // pred_region
      _
    $region17: #{tpu_custom_call.1} parent=1 // pred_fallthru
      _
    // Predicated region
    $region18: #{tpu_custom_call.1} parent=1 // pred_check
      _
    $region19: #{tpu_custom_call.1} parent=1 // pred_check_branch
      %47 = sbr.rel (0) target = $region21
    $region20: #{tpu_custom_call.1} parent=1 // pred_region
      _
    $region21: #{tpu_custom_call.1} parent=1 // pred_fallthru
      _
    // Predicated region
    $region22: #{tpu_custom_call.1} parent=1 // pred_check
      _
    $region23: #{tpu_custom_call.1} parent=1 // pred_check_branch
      %49 = sbr.rel (0) target = $region25
    $region24: #{tpu_custom_call.1} parent=1 // pred_region
      %51 = vsyncadd [#allocation7], 0
      %s52 = sshll.u32 %s5, 4
      %s53 = int_to_ptr.hbm [resolvable:$true] %s52
      %s54 = sshll.u32 [#allocation8], 4
      %s55 = int_to_ptr.vmem [resolvable:$true] %s54
      %60 = dma.hbm_to_vmem [thread:$0]  %s53, 16384, %s55, [#allocation7], 1024, 1024, 64
    $region25: #{tpu_custom_call.1} parent=1 // pred_fallthru
      _
    // Predicated region
    $region26: #{tpu_custom_call.1} parent=1 // pred_check
      _
    $region27: #{tpu_custom_call.1} parent=1 // pred_check_branch
      %62 = sbr.rel (0) target = $region29
    $region28: #{tpu_custom_call.1} parent=1 // pred_region
      %64 = vsyncadd [#allocation10], 0
      %s66 = sshll.u32 %s6, 4
      %s67 = int_to_ptr.hbm [resolvable:$true] %s66
      %s68 = sshll.u32 [#allocation9], 4
      %s69 = int_to_ptr.vmem [resolvable:$true] %s68
      %71 = dma.hbm_to_vmem [thread:$0]  %s67, 128, %s69, [#allocation10]
    $region29: #{tpu_custom_call.1} parent=1 // pred_fallthru
      _
    // Predicated region
    $region30: #{tpu_custom_call.1} parent=1 // pred_check
      _
    $region31: #{tpu_custom_call.1} parent=1 // pred_check_branch
      %73 = sbr.rel (0) target = $region33
    $region32: #{tpu_custom_call.1} parent=1 // pred_region
      %75 = dma.done [#allocation4], 256
    $region33: #{tpu_custom_call.1} parent=1 // pred_fallthru
      _
    // Predicated region
    $region34: #{tpu_custom_call.1} parent=1 // pred_check
      _
    $region35: #{tpu_custom_call.1} parent=1 // pred_check_branch
      %77 = sbr.rel (0) target = $region37
    $region36: #{tpu_custom_call.1} parent=1 // pred_region
      %79 = dma.done [#allocation7], 2048
    $region37: #{tpu_custom_call.1} parent=1 // pred_fallthru
      _
    // Predicated region
    $region38: #{tpu_custom_call.1} parent=1 // pred_check
      _
    $region39: #{tpu_custom_call.1} parent=1 // pred_check_branch
      %81 = sbr.rel (0) target = $region41
    $region40: #{tpu_custom_call.1} parent=1 // pred_region
      %83 = dma.done [#allocation7], 16384
    $region41: #{tpu_custom_call.1} parent=1 // pred_fallthru
      _
    // Predicated region
    $region42: #{tpu_custom_call.1} parent=1 // pred_check
      _
    $region43: #{tpu_custom_call.1} parent=1 // pred_check_branch
      %85 = sbr.rel (0) target = $region45
    $region44: #{tpu_custom_call.1} parent=1 // pred_region
      %87 = dma.done [#allocation10], 128
    $region45: #{tpu_custom_call.1} parent=1 // pred_fallthru
      _
    %p88 = scmp.eq.s32.totalorder 0, 0
    // Predicated region
    $region46: #{tpu_custom_call.1} parent=1 // pred_check
      %p89 = pneg %p88
    $region47: #{tpu_custom_call.1} parent=1 // pred_check_branch
      %91 = sbr.rel (%p89) target = $region49
    $region48: #{tpu_custom_call.1} parent=1 // pred_region
      %v92 = vld [vmem:[#allocation3] sm:$0xff]
      %v93 = vld [vmem:[#allocation3 + $0x8] sm:$0xff]
      %v94 = vld [vmem:[#allocation6] sm:$0xff]
      %v95 = vld [vmem:[#allocation6 + $0x8] sm:$0xff]
      %v96 = vld [vmem:[#allocation6 + $0x10] sm:$0xff]
      %v97 = vld [vmem:[#allocation6 + $0x18] sm:$0xff]
      %v98 = vld [vmem:[#allocation6 + $0x20] sm:$0xff]
      %v99 = vld [vmem:[#allocation6 + $0x28] sm:$0xff]
      %v100 = vld [vmem:[#allocation6 + $0x30] sm:$0xff]
      %v101 = vld [vmem:[#allocation6 + $0x38] sm:$0xff]
      %v102 = vld [vmem:[#allocation6 + $0x40] sm:$0xff]
      %v103 = vld [vmem:[#allocation6 + $0x48] sm:$0xff]
      %v104 = vld [vmem:[#allocation6 + $0x50] sm:$0xff]
      %v105 = vld [vmem:[#allocation6 + $0x58] sm:$0xff]
      %v106 = vld [vmem:[#allocation6 + $0x60] sm:$0xff]
      %v107 = vld [vmem:[#allocation6 + $0x68] sm:$0xff]
      %v108 = vld [vmem:[#allocation6 + $0x70] sm:$0xff]
      %v109 = vld [vmem:[#allocation6 + $0x78] sm:$0xff]
      %v110 = vld [vmem:[%s2] sm:$0x1]
      %v112 = vperm.slane %v110, 0
      %114 = vmatpush.msra.mxu0 %v109
      %115 = vmatpush.msra.mxu0 %v108
      %116 = vmatpush.msra.mxu0 %v107
      %117 = vmatpush.msra.mxu0 %v106
      %118 = vmatpush.msra.mxu0 %v105
      %119 = vmatpush.msra.mxu0 %v104
      %120 = vmatpush.msra.mxu0 %v103
      %121 = vmatpush.msra.mxu0 %v102
      %122 = vmatpush.msra.mxu0 %v101
      %123 = vmatpush.msra.mxu0 %v100
      %124 = vmatpush.msra.mxu0 %v99
      %125 = vmatpush.msra.mxu0 %v98
      %126 = vmatpush.msra.mxu0 %v97
      %127 = vmatpush.msra.mxu0 %v96
      %128 = vmatpush.msra.mxu0 %v95
      %129 = vmatpush.msra.mxu0 %v94
      %130 = vmatmul.f32.gmra.mxu0 %v92
      %v131 = vpop.f32.mrf.mxu0
      %v132 = vadd.f32 %v112, %v131
      %133 = vmatmul.f32.gmra.mxu0 %v93
      %v134 = vpop.f32.mrf.mxu0
      %v135 = vadd.f32 %v112, %v134
      %136 = vdwg.mxu0
      %v137 = vmul.f32 %v132, 0.5
      %v138 = vmul.f32 %v135, 0.5
      %v139 = vmul.f32 %v132, 0.70710677
      %v140 = vmul.f32 %v135, 0.70710677
      %v141 = vand.u32 2147483647, %v139
      %v142 = vand.u32 2147483647, %v140
      %v143 = vmul.f32 %v141, 0.3275911
      %v144 = vmul.f32 %v142, 0.3275911
      %v145 = vadd.f32 %v143, 1.0
      %v146 = vadd.f32 %v144, 1.0
      %v147 = vrcp.pop %v145
      %v148 = vmul.f32 %v145, %v147
      %v149 = vsub.f32 1.0, %v148
      %v150 = vmul.f32 %v147, %v149
      %v151 = vadd.f32 %v147, %v150
      %vm152 = vweird.f32 %v145
      %vm153 = vweird.f32 %v147
      %vm154 = vmor %vm152, %vm153
      %v155 = vsel %vm154, %v147, %v151
      %v156 = vand.u32 2147483647, %v145
      %vm157 = vcmp.eq.f32.partialorder %v156, 8.507059e+37
      %v158 = vand.u32 %v145, 2147483648
      %v159 = vor.u32 1.1754944e-38, %v158
      %v160 = vsel %vm157, %v159, %v155
      %v161 = vmul.f32 1.0, %v160
      %v162 = vrcp.pop %v146
      %v163 = vmul.f32 %v146, %v162
      %v164 = vsub.f32 1.0, %v163
      %v165 = vmul.f32 %v162, %v164
      %v166 = vadd.f32 %v162, %v165
      %vm167 = vweird.f32 %v146
      %vm168 = vweird.f32 %v162
      %vm169 = vmor %vm167, %vm168
      %v170 = vsel %vm169, %v162, %v166
      %v171 = vand.u32 2147483647, %v146
      %vm172 = vcmp.eq.f32.partialorder %v171, 8.507059e+37
      %v173 = vand.u32 %v146, 2147483648
      %v174 = vor.u32 1.1754944e-38, %v173
      %v175 = vsel %vm172, %v174, %v170
      %v176 = vmul.f32 1.0, %v175
      %v177 = vmul.f32 %v161, 1.0614054
      %v178 = vmul.f32 %v176, 1.0614054
      %v179 = vadd.f32 %v177, -1.4531521
      %v180 = vadd.f32 %v178, -1.4531521
      %v181 = vmul.f32 %v161, %v179
      %v182 = vmul.f32 %v176, %v180
      %v183 = vadd.f32 %v181, 1.4214138
      %v184 = vadd.f32 %v182, 1.4214138
      %v185 = vmul.f32 %v161, %v183
      %v186 = vmul.f32 %v176, %v184
      %v187 = vadd.f32 %v185, -0.28449672
      %v188 = vadd.f32 %v186, -0.28449672
      %v189 = vmul.f32 %v161, %v187
      %v190 = vmul.f32 %v176, %v188
      %v191 = vadd.f32 %v189, 0.2548296
      %v192 = vadd.f32 %v190, 0.2548296
      %v193 = vmul.f32 %v161, %v191
      %v194 = vmul.f32 %v176, %v192
      %v195 = vmul.f32 %v141, %v141
      %v196 = vmul.f32 %v142, %v142
      %v197 = vsub.f32 0.0, %v195
      %v198 = vsub.f32 0.0, %v196
      %v199 = vmul.f32 %v197, 1.442695
      %v200 = vpow.pop %v199
      %v201 = vmul.f32 %v198, 1.442695
      %v202 = vpow.pop %v201
      %v203 = vmul.f32 %v193, %v200
      %v204 = vmul.f32 %v194, %v202
      %v205 = vsub.f32 1.0, %v203
      %v206 = vsub.f32 1.0, %v204
      %vm207 = vcmp.lt.f32.partialorder %v139, 0.0
      %vm208 = vcmp.lt.f32.partialorder %v140, 0.0
      %v209 = vsub.f32 0.0, %v205
      %v210 = vsub.f32 0.0, %v206
      %v211 = vsel %vm207, %v209, %v205
      %v212 = vsel %vm208, %v210, %v206
      %v213 = vadd.f32 %v211, 1.0
      %v214 = vadd.f32 %v212, 1.0
      %v215 = vmul.f32 %v137, %v213
      %v216 = vmul.f32 %v138, %v214
      %217 = vadd.xlane.f32.xlu0 %v215
      %v218 = vpop.xlane.xlu0 %217
      %219 = vadd.xlane.f32.xlu0 %v216
      %v220 = vpop.xlane.xlu0 %219
      %v221 = vrcp.pop 128.0
      %v222 = vmul.f32 128.0, %v221
      %v223 = vsub.f32 1.0, %v222
      %v224 = vmul.f32 %v221, %v223
      %v225 = vadd.f32 %v221, %v224
      %vm226 = vweird.f32 %v221
      %v227 = vsel %vm226, %v221, %v225
      %v228 = vmul.f32 %v218, %v227
      %v229 = vmul.f32 %v220, %v227
      %v230 = vsub.f32 %v215, %v228
      %v231 = vsub.f32 %v216, %v229
      %v232 = vmul.f32 %v230, %v230
      %v233 = vmul.f32 %v231, %v231
      %234 = vadd.xlane.f32.xlu0 %v232
      %v235 = vpop.xlane.xlu0 %234
      %236 = vadd.xlane.f32.xlu0 %v233
      %v237 = vpop.xlane.xlu0 %236
      %v238 = vmul.f32 %v235, %v227
      %v239 = vmul.f32 %v237, %v227
      %v240 = vadd.f32 %v238, 1e-05
      %v241 = vadd.f32 %v239, 1e-05
      %v242 = vrsqrt.pop %v240
      %v243 = vmul.f32 %v242, %v240
      %v244 = vmul.f32 %v243, %v242
      %v245 = vmul.f32 0.5, %v244
      %v246 = vsub.f32 1.5, %v245
      %v247 = vmul.f32 %v242, %v246
      %vm248 = vweird.f32 %v240
      %vm249 = vweird.f32 %v242
      %vm250 = vmor %vm248, %vm249
      %v251 = vsel %vm250, %v242, %v247
      %v252 = vrsqrt.pop %v241
      %v253 = vmul.f32 %v252, %v241
      %v254 = vmul.f32 %v253, %v252
      %v255 = vmul.f32 0.5, %v254
      %v256 = vsub.f32 1.5, %v255
      %v257 = vmul.f32 %v252, %v256
      %vm258 = vweird.f32 %v241
      %vm259 = vweird.f32 %v252
      %vm260 = vmor %vm258, %vm259
      %v261 = vsel %vm260, %v252, %v257
      %v262 = vmul.f32 %v230, %v251
      %v263 = vmul.f32 %v231, %v261
      %v264 = vld [vmem:[%s3] sm:$0x1]
      %v266 = vperm.slane %v264, 0
      %v268 = vmul.f32 %v262, %v266
      %v269 = vmul.f32 %v263, %v266
      %v270 = vld [vmem:[%s4] sm:$0x1]
      %v272 = vperm.slane %v270, 0
      %v274 = vadd.f32 %v268, %v272
      %v275 = vadd.f32 %v269, %v272
      %276 = vst [vmem:[#allocation2] sm:$0xff] %v274
      %277 = vst [vmem:[#allocation2 + $0x8] sm:$0xff] %v275
    $region49: #{tpu_custom_call.1} parent=1 // pred_fallthru
      _
    %v278 = vld [vmem:[#allocation2] sm:$0xff]
    %v279 = vld [vmem:[#allocation2 + $0x8] sm:$0xff]
    %v280 = vld [vmem:[#allocation8] sm:$0xff]
    %v281 = vld [vmem:[#allocation8 + $0x8] sm:$0xff]
    %v282 = vld [vmem:[#allocation8 + $0x10] sm:$0xff]
    %v283 = vld [vmem:[#allocation8 + $0x18] sm:$0xff]
    %v284 = vld [vmem:[#allocation8 + $0x20] sm:$0xff]
    %v285 = vld [vmem:[#allocation8 + $0x28] sm:$0xff]
    %v286 = vld [vmem:[#allocation8 + $0x30] sm:$0xff]
    %v287 = vld [vmem:[#allocation8 + $0x38] sm:$0xff]
    %v288 = vld [vmem:[#allocation8 + $0x40] sm:$0xff]
    %v289 = vld [vmem:[#allocation8 + $0x48] sm:$0xff]
    %v290 = vld [vmem:[#allocation8 + $0x50] sm:$0xff]
    %v291 = vld [vmem:[#allocation8 + $0x58] sm:$0xff]
    %v292 = vld [vmem:[#allocation8 + $0x60] sm:$0xff]
    %v293 = vld [vmem:[#allocation8 + $0x68] sm:$0xff]
    %v294 = vld [vmem:[#allocation8 + $0x70] sm:$0xff]
    %v295 = vld [vmem:[#allocation8 + $0x78] sm:$0xff]
    %v296 = vld [vmem:[#allocation8 + $0x80] sm:$0xff]
    %v297 = vld [vmem:[#allocation8 + $0x88] sm:$0xff]
    %v298 = vld [vmem:[#allocation8 + $0x90] sm:$0xff]
    %v299 = vld [vmem:[#allocation8 + $0x98] sm:$0xff]
    %v300 = vld [vmem:[#allocation8 + $0xa0] sm:$0xff]
    %v301 = vld [vmem:[#allocation8 + $0xa8] sm:$0xff]
    %v302 = vld [vmem:[#allocation8 + $0xb0] sm:$0xff]
    %v303 = vld [vmem:[#allocation8 + $0xb8] sm:$0xff]
    %v304 = vld [vmem:[#allocation8 + $0xc0] sm:$0xff]
    %v305 = vld [vmem:[#allocation8 + $0xc8] sm:$0xff]
    %v306 = vld [vmem:[#allocation8 + $0xd0] sm:$0xff]
    %v307 = vld [vmem:[#allocation8 + $0xd8] sm:$0xff]
    %v308 = vld [vmem:[#allocation8 + $0xe0] sm:$0xff]
    %v309 = vld [vmem:[#allocation8 + $0xe8] sm:$0xff]
    %v310 = vld [vmem:[#allocation8 + $0xf0] sm:$0xff]
    %v311 = vld [vmem:[#allocation8 + $0xf8] sm:$0xff]
    %v312 = vld [vmem:[#allocation8 + $0x100] sm:$0xff]
    %v313 = vld [vmem:[#allocation8 + $0x108] sm:$0xff]
    %v314 = vld [vmem:[#allocation8 + $0x110] sm:$0xff]
    %v315 = vld [vmem:[#allocation8 + $0x118] sm:$0xff]
    %v316 = vld [vmem:[#allocation8 + $0x120] sm:$0xff]
    %v317 = vld [vmem:[#allocation8 + $0x128] sm:$0xff]
    %v318 = vld [vmem:[#allocation8 + $0x130] sm:$0xff]
    %v319 = vld [vmem:[#allocation8 + $0x138] sm:$0xff]
    %v320 = vld [vmem:[#allocation8 + $0x140] sm:$0xff]
    %v321 = vld [vmem:[#allocation8 + $0x148] sm:$0xff]
    %v322 = vld [vmem:[#allocation8 + $0x150] sm:$0xff]
    %v323 = vld [vmem:[#allocation8 + $0x158] sm:$0xff]
    %v324 = vld [vmem:[#allocation8 + $0x160] sm:$0xff]
    %v325 = vld [vmem:[#allocation8 + $0x168] sm:$0xff]
    %v326 = vld [vmem:[#allocation8 + $0x170] sm:$0xff]
    %v327 = vld [vmem:[#allocation8 + $0x178] sm:$0xff]
    %v328 = vld [vmem:[#allocation8 + $0x180] sm:$0xff]
    %v329 = vld [vmem:[#allocation8 + $0x188] sm:$0xff]
    %v330 = vld [vmem:[#allocation8 + $0x190] sm:$0xff]
    %v331 = vld [vmem:[#allocation8 + $0x198] sm:$0xff]
    %v332 = vld [vmem:[#allocation8 + $0x1a0] sm:$0xff]
    %v333 = vld [vmem:[#allocation8 + $0x1a8] sm:$0xff]
    %v334 = vld [vmem:[#allocation8 + $0x1b0] sm:$0xff]
    %v335 = vld [vmem:[#allocation8 + $0x1b8] sm:$0xff]
    %v336 = vld [vmem:[#allocation8 + $0x1c0] sm:$0xff]
    %v337 = vld [vmem:[#allocation8 + $0x1c8] sm:$0xff]
    %v338 = vld [vmem:[#allocation8 + $0x1d0] sm:$0xff]
    %v339 = vld [vmem:[#allocation8 + $0x1d8] sm:$0xff]
    %v340 = vld [vmem:[#allocation8 + $0x1e0] sm:$0xff]
    %v341 = vld [vmem:[#allocation8 + $0x1e8] sm:$0xff]
    %v342 = vld [vmem:[#allocation8 + $0x1f0] sm:$0xff]
    %v343 = vld [vmem:[#allocation8 + $0x1f8] sm:$0xff]
    %v344 = vld [vmem:[#allocation8 + $0x200] sm:$0xff]
    %v345 = vld [vmem:[#allocation8 + $0x208] sm:$0xff]
    %v346 = vld [vmem:[#allocation8 + $0x210] sm:$0xff]
    %v347 = vld [vmem:[#allocation8 + $0x218] sm:$0xff]
    %v348 = vld [vmem:[#allocation8 + $0x220] sm:$0xff]
    %v349 = vld [vmem:[#allocation8 + $0x228] sm:$0xff]
    %v350 = vld [vmem:[#allocation8 + $0x230] sm:$0xff]
    %v351 = vld [vmem:[#allocation8 + $0x238] sm:$0xff]
    %v352 = vld [vmem:[#allocation8 + $0x240] sm:$0xff]
    %v353 = vld [vmem:[#allocation8 + $0x248] sm:$0xff]
    %v354 = vld [vmem:[#allocation8 + $0x250] sm:$0xff]
    %v355 = vld [vmem:[#allocation8 + $0x258] sm:$0xff]
    %v356 = vld [vmem:[#allocation8 + $0x260] sm:$0xff]
    %v357 = vld [vmem:[#allocation8 + $0x268] sm:$0xff]
    %v358 = vld [vmem:[#allocation8 + $0x270] sm:$0xff]
    %v359 = vld [vmem:[#allocation8 + $0x278] sm:$0xff]
    %v360 = vld [vmem:[#allocation8 + $0x280] sm:$0xff]
    %v361 = vld [vmem:[#allocation8 + $0x288] sm:$0xff]
    %v362 = vld [vmem:[#allocation8 + $0x290] sm:$0xff]
    %v363 = vld [vmem:[#allocation8 + $0x298] sm:$0xff]
    %v364 = vld [vmem:[#allocation8 + $0x2a0] sm:$0xff]
    %v365 = vld [vmem:[#allocation8 + $0x2a8] sm:$0xff]
    %v366 = vld [vmem:[#allocation8 + $0x2b0] sm:$0xff]
    %v367 = vld [vmem:[#allocation8 + $0x2b8] sm:$0xff]
    %v368 = vld [vmem:[#allocation8 + $0x2c0] sm:$0xff]
    %v369 = vld [vmem:[#allocation8 + $0x2c8] sm:$0xff]
    %v370 = vld [vmem:[#allocation8 + $0x2d0] sm:$0xff]
    %v371 = vld [vmem:[#allocation8 + $0x2d8] sm:$0xff]
    %v372 = vld [vmem:[#allocation8 + $0x2e0] sm:$0xff]
    %v373 = vld [vmem:[#allocation8 + $0x2e8] sm:$0xff]
    %v374 = vld [vmem:[#allocation8 + $0x2f0] sm:$0xff]
    %v375 = vld [vmem:[#allocation8 + $0x2f8] sm:$0xff]
    %v376 = vld [vmem:[#allocation8 + $0x300] sm:$0xff]
    %v377 = vld [vmem:[#allocation8 + $0x308] sm:$0xff]
    %v378 = vld [vmem:[#allocation8 + $0x310] sm:$0xff]
    %v379 = vld [vmem:[#allocation8 + $0x318] sm:$0xff]
    %v380 = vld [vmem:[#allocation8 + $0x320] sm:$0xff]
    %v381 = vld [vmem:[#allocation8 + $0x328] sm:$0xff]
    %v382 = vld [vmem:[#allocation8 + $0x330] sm:$0xff]
    %v383 = vld [vmem:[#allocation8 + $0x338] sm:$0xff]
    %v384 = vld [vmem:[#allocation8 + $0x340] sm:$0xff]
    %v385 = vld [vmem:[#allocation8 + $0x348] sm:$0xff]
    %v386 = vld [vmem:[#allocation8 + $0x350] sm:$0xff]
    %v387 = vld [vmem:[#allocation8 + $0x358] sm:$0xff]
    %v388 = vld [vmem:[#allocation8 + $0x360] sm:$0xff]
    %v389 = vld [vmem:[#allocation8 + $0x368] sm:$0xff]
    %v390 = vld [vmem:[#allocation8 + $0x370] sm:$0xff]
    %v391 = vld [vmem:[#allocation8 + $0x378] sm:$0xff]
    %v392 = vld [vmem:[#allocation8 + $0x380] sm:$0xff]
    %v393 = vld [vmem:[#allocation8 + $0x388] sm:$0xff]
    %v394 = vld [vmem:[#allocation8 + $0x390] sm:$0xff]
    %v395 = vld [vmem:[#allocation8 + $0x398] sm:$0xff]
    %v396 = vld [vmem:[#allocation8 + $0x3a0] sm:$0xff]
    %v397 = vld [vmem:[#allocation8 + $0x3a8] sm:$0xff]
    %v398 = vld [vmem:[#allocation8 + $0x3b0] sm:$0xff]
    %v399 = vld [vmem:[#allocation8 + $0x3b8] sm:$0xff]
    %v400 = vld [vmem:[#allocation8 + $0x3c0] sm:$0xff]
    %v401 = vld [vmem:[#allocation8 + $0x3c8] sm:$0xff]
    %v402 = vld [vmem:[#allocation8 + $0x3d0] sm:$0xff]
    %v403 = vld [vmem:[#allocation8 + $0x3d8] sm:$0xff]
    %v404 = vld [vmem:[#allocation8 + $0x3e0] sm:$0xff]
    %v405 = vld [vmem:[#allocation8 + $0x3e8] sm:$0xff]
    %v406 = vld [vmem:[#allocation8 + $0x3f0] sm:$0xff]
    %v407 = vld [vmem:[#allocation8 + $0x3f8] sm:$0xff]
    %v408 = vld [vmem:[#allocation9] sm:$0xff]
    %v410 = vperm.slane %v408, 0
    %v411 = vperm.slane %v408, 1
    %v412 = vperm.slane %v408, 2
    %v413 = vperm.slane %v408, 3
    %v414 = vperm.slane %v408, 4
    %v415 = vperm.slane %v408, 5
    %v416 = vperm.slane %v408, 6
    %v417 = vperm.slane %v408, 7
    %426 = vmatpush.msra.mxu0 %v400
    %427 = vmatpush.msra.mxu0 %v392
    %428 = vmatpush.msra.mxu0 %v384
    %429 = vmatpush.msra.mxu0 %v376
    %430 = vmatpush.msra.mxu0 %v368
    %431 = vmatpush.msra.mxu0 %v360
    %432 = vmatpush.msra.mxu0 %v352
    %433 = vmatpush.msra.mxu0 %v344
    %434 = vmatpush.msra.mxu0 %v336
    %435 = vmatpush.msra.mxu0 %v328
    %436 = vmatpush.msra.mxu0 %v320
    %437 = vmatpush.msra.mxu0 %v312
    %438 = vmatpush.msra.mxu0 %v304
    %439 = vmatpush.msra.mxu0 %v296
    %440 = vmatpush.msra.mxu0 %v288
    %441 = vmatpush.msra.mxu0 %v280
    %442 = vmatmul.f32.gmra.mxu0 %v278
    %v443 = vpop.f32.mrf.mxu0
    %v444 = vadd.f32 %v410, %v443
    %445 = vmatmul.f32.gmra.mxu0 %v279
    %v446 = vpop.f32.mrf.mxu0
    %v447 = vadd.f32 %v410, %v446
    %448 = vdwg.mxu0
    %449 = vmatpush.msra.mxu0 %v401
    %450 = vmatpush.msra.mxu0 %v393
    %451 = vmatpush.msra.mxu0 %v385
    %452 = vmatpush.msra.mxu0 %v377
    %453 = vmatpush.msra.mxu0 %v369
    %454 = vmatpush.msra.mxu0 %v361
    %455 = vmatpush.msra.mxu0 %v353
    %456 = vmatpush.msra.mxu0 %v345
    %457 = vmatpush.msra.mxu0 %v337
    %458 = vmatpush.msra.mxu0 %v329
    %459 = vmatpush.msra.mxu0 %v321
    %460 = vmatpush.msra.mxu0 %v313
    %461 = vmatpush.msra.mxu0 %v305
    %462 = vmatpush.msra.mxu0 %v297
    %463 = vmatpush.msra.mxu0 %v289
    %464 = vmatpush.msra.mxu0 %v281
    %465 = vmatmul.f32.gmra.mxu0 %v278
    %v466 = vpop.f32.mrf.mxu0
    %v467 = vadd.f32 %v411, %v466
    %468 = vmatmul.f32.gmra.mxu0 %v279
    %v469 = vpop.f32.mrf.mxu0
    %v470 = vadd.f32 %v411, %v469
    %471 = vdwg.mxu0
    %472 = vmatpush.msra.mxu0 %v402
    %473 = vmatpush.msra.mxu0 %v394
    %474 = vmatpush.msra.mxu0 %v386
    %475 = vmatpush.msra.mxu0 %v378
    %476 = vmatpush.msra.mxu0 %v370
    %477 = vmatpush.msra.mxu0 %v362
    %478 = vmatpush.msra.mxu0 %v354
    %479 = vmatpush.msra.mxu0 %v346
    %480 = vmatpush.msra.mxu0 %v338
    %481 = vmatpush.msra.mxu0 %v330
    %482 = vmatpush.msra.mxu0 %v322
    %483 = vmatpush.msra.mxu0 %v314
    %484 = vmatpush.msra.mxu0 %v306
    %485 = vmatpush.msra.mxu0 %v298
    %486 = vmatpush.msra.mxu0 %v290
    %487 = vmatpush.msra.mxu0 %v282
    %488 = vmatmul.f32.gmra.mxu0 %v278
    %v489 = vpop.f32.mrf.mxu0
    %v490 = vadd.f32 %v412, %v489
    %491 = vmatmul.f32.gmra.mxu0 %v279
    %v492 = vpop.f32.mrf.mxu0
    %v493 = vadd.f32 %v412, %v492
    %494 = vdwg.mxu0
    %495 = vmatpush.msra.mxu0 %v403
    %496 = vmatpush.msra.mxu0 %v395
    %497 = vmatpush.msra.mxu0 %v387
    %498 = vmatpush.msra.mxu0 %v379
    %499 = vmatpush.msra.mxu0 %v371
    %500 = vmatpush.msra.mxu0 %v363
    %501 = vmatpush.msra.mxu0 %v355
    %502 = vmatpush.msra.mxu0 %v347
    %503 = vmatpush.msra.mxu0 %v339
    %504 = vmatpush.msra.mxu0 %v331
    %505 = vmatpush.msra.mxu0 %v323
    %506 = vmatpush.msra.mxu0 %v315
    %507 = vmatpush.msra.mxu0 %v307
    %508 = vmatpush.msra.mxu0 %v299
    %509 = vmatpush.msra.mxu0 %v291
    %510 = vmatpush.msra.mxu0 %v283
    %511 = vmatmul.f32.gmra.mxu0 %v278
    %v512 = vpop.f32.mrf.mxu0
    %v513 = vadd.f32 %v413, %v512
    %514 = vmatmul.f32.gmra.mxu0 %v279
    %v515 = vpop.f32.mrf.mxu0
    %v516 = vadd.f32 %v413, %v515
    %517 = vdwg.mxu0
    %518 = vmatpush.msra.mxu0 %v404
    %519 = vmatpush.msra.mxu0 %v396
    %520 = vmatpush.msra.mxu0 %v388
    %521 = vmatpush.msra.mxu0 %v380
    %522 = vmatpush.msra.mxu0 %v372
    %523 = vmatpush.msra.mxu0 %v364
    %524 = vmatpush.msra.mxu0 %v356
    %525 = vmatpush.msra.mxu0 %v348
    %526 = vmatpush.msra.mxu0 %v340
    %527 = vmatpush.msra.mxu0 %v332
    %528 = vmatpush.msra.mxu0 %v324
    %529 = vmatpush.msra.mxu0 %v316
    %530 = vmatpush.msra.mxu0 %v308
    %531 = vmatpush.msra.mxu0 %v300
    %532 = vmatpush.msra.mxu0 %v292
    %533 = vmatpush.msra.mxu0 %v284
    %534 = vmatmul.f32.gmra.mxu0 %v278
    %v535 = vpop.f32.mrf.mxu0
    %v536 = vadd.f32 %v414, %v535
    %537 = vmatmul.f32.gmra.mxu0 %v279
    %v538 = vpop.f32.mrf.mxu0
    %v539 = vadd.f32 %v414, %v538
    %540 = vdwg.mxu0
    %541 = vmatpush.msra.mxu0 %v405
    %542 = vmatpush.msra.mxu0 %v397
    %543 = vmatpush.msra.mxu0 %v389
    %544 = vmatpush.msra.mxu0 %v381
    %545 = vmatpush.msra.mxu0 %v373
    %546 = vmatpush.msra.mxu0 %v365
    %547 = vmatpush.msra.mxu0 %v357
    %548 = vmatpush.msra.mxu0 %v349
    %549 = vmatpush.msra.mxu0 %v341
    %550 = vmatpush.msra.mxu0 %v333
    %551 = vmatpush.msra.mxu0 %v325
    %552 = vmatpush.msra.mxu0 %v317
    %553 = vmatpush.msra.mxu0 %v309
    %554 = vmatpush.msra.mxu0 %v301
    %555 = vmatpush.msra.mxu0 %v293
    %556 = vmatpush.msra.mxu0 %v285
    %557 = vmatmul.f32.gmra.mxu0 %v278
    %v558 = vpop.f32.mrf.mxu0
    %v559 = vadd.f32 %v415, %v558
    %560 = vmatmul.f32.gmra.mxu0 %v279
    %v561 = vpop.f32.mrf.mxu0
    %v562 = vadd.f32 %v415, %v561
    %563 = vdwg.mxu0
    %564 = vmatpush.msra.mxu0 %v406
    %565 = vmatpush.msra.mxu0 %v398
    %566 = vmatpush.msra.mxu0 %v390
    %567 = vmatpush.msra.mxu0 %v382
    %568 = vmatpush.msra.mxu0 %v374
    %569 = vmatpush.msra.mxu0 %v366
    %570 = vmatpush.msra.mxu0 %v358
    %571 = vmatpush.msra.mxu0 %v350
    %572 = vmatpush.msra.mxu0 %v342
    %573 = vmatpush.msra.mxu0 %v334
    %574 = vmatpush.msra.mxu0 %v326
    %575 = vmatpush.msra.mxu0 %v318
    %576 = vmatpush.msra.mxu0 %v310
    %577 = vmatpush.msra.mxu0 %v302
    %578 = vmatpush.msra.mxu0 %v294
    %579 = vmatpush.msra.mxu0 %v286
    %580 = vmatmul.f32.gmra.mxu0 %v278
    %v581 = vpop.f32.mrf.mxu0
    %v582 = vadd.f32 %v416, %v581
    %583 = vmatmul.f32.gmra.mxu0 %v279
    %v584 = vpop.f32.mrf.mxu0
    %v585 = vadd.f32 %v416, %v584
    %586 = vdwg.mxu0
    %587 = vmatpush.msra.mxu0 %v407
    %588 = vmatpush.msra.mxu0 %v399
    %589 = vmatpush.msra.mxu0 %v391
    %590 = vmatpush.msra.mxu0 %v383
    %591 = vmatpush.msra.mxu0 %v375
    %592 = vmatpush.msra.mxu0 %v367
    %593 = vmatpush.msra.mxu0 %v359
    %594 = vmatpush.msra.mxu0 %v351
    %595 = vmatpush.msra.mxu0 %v343
    %596 = vmatpush.msra.mxu0 %v335
    %597 = vmatpush.msra.mxu0 %v327
    %598 = vmatpush.msra.mxu0 %v319
    %599 = vmatpush.msra.mxu0 %v311
    %600 = vmatpush.msra.mxu0 %v303
    %601 = vmatpush.msra.mxu0 %v295
    %602 = vmatpush.msra.mxu0 %v287
    %603 = vmatmul.f32.gmra.mxu0 %v278
    %v604 = vpop.f32.mrf.mxu0
    %v605 = vadd.f32 %v417, %v604
    %606 = vmatmul.f32.gmra.mxu0 %v279
    %v607 = vpop.f32.mrf.mxu0
    %v608 = vadd.f32 %v417, %v607
    %609 = vdwg.mxu0
    %610 = vst [vmem:[#allocation11] sm:$0xff] %v444
    %611 = vst [vmem:[#allocation11 + $0x8] sm:$0xff] %v467
    %612 = vst [vmem:[#allocation11 + $0x10] sm:$0xff] %v490
    %613 = vst [vmem:[#allocation11 + $0x18] sm:$0xff] %v513
    %614 = vst [vmem:[#allocation11 + $0x20] sm:$0xff] %v536
    %615 = vst [vmem:[#allocation11 + $0x28] sm:$0xff] %v559
    %616 = vst [vmem:[#allocation11 + $0x30] sm:$0xff] %v582
    %617 = vst [vmem:[#allocation11 + $0x38] sm:$0xff] %v605
    %618 = vst [vmem:[#allocation11 + $0x40] sm:$0xff] %v447
    %619 = vst [vmem:[#allocation11 + $0x48] sm:$0xff] %v470
    %620 = vst [vmem:[#allocation11 + $0x50] sm:$0xff] %v493
    %621 = vst [vmem:[#allocation11 + $0x58] sm:$0xff] %v516
    %622 = vst [vmem:[#allocation11 + $0x60] sm:$0xff] %v539
    %623 = vst [vmem:[#allocation11 + $0x68] sm:$0xff] %v562
    %624 = vst [vmem:[#allocation11 + $0x70] sm:$0xff] %v585
    %625 = vst [vmem:[#allocation11 + $0x78] sm:$0xff] %v608
    // Predicated region
    $region50: #{tpu_custom_call.1} parent=1 // pred_check
      _
    $region51: #{tpu_custom_call.1} parent=1 // pred_check_branch
      %627 = sbr.rel (0) target = $region53
    $region52: #{tpu_custom_call.1} parent=1 // pred_region
      %629 = vsyncadd [#allocation5], 0
      %s630 = sshll.u32 [#allocation11], 4
      %s631 = int_to_ptr.vmem [resolvable:$true] %s630
      %s632 = sshll.u32 %s7, 4
      %s633 = int_to_ptr.hbm [resolvable:$true] %s632
      %638 = dma.vmem_to_hbm [thread:$0]  %s631, 2048, %s633, [#allocation5], 1024, 1024, 64
    $region53: #{tpu_custom_call.1} parent=1 // pred_fallthru
      _
    // Predicated region
    $region54: #{tpu_custom_call.1} parent=1 // pred_check
      _
    $region55: #{tpu_custom_call.1} parent=1 // pred_check_branch
      %640 = sbr.rel (0) target = $region57
    $region56: #{tpu_custom_call.1} parent=1 // pred_region
      %642 = dma.done [#allocation5], 2048
    $region57: #{tpu_custom_call.1} parent=1 // pred_fallthru
      _
    %643 = vsyncpa [#allocation4], 1
    %644 = vsyncpa [#allocation7], 1
    %645 = vsyncpa [#allocation10], 1
    %646 = vsyncpa [#allocation5], 1

</llo_original>
